<compile_context>
chip_gen: v7x
topology: tpu7x:2x2x1
jax: 0.10.0
libtpu: 0.0.40
codegen_flags: <defaults>
</compile_context>

<pallas_src>
import functools

import jax
import jax.numpy as jnp
from jax.experimental import pallas as pl
from jax.experimental.pallas import tpu as pltpu


SKELETON_KEYS = ("rh", "lh", "body")
_LANE = 128  # class dim padded up to a multiple of 128 -> lane-dense output store


# --------------------------------------------------------------------------
# Fused kernel: motion diff + per-frame K-split matmuls (+ 2-stream average)
# --------------------------------------------------------------------------
def _fused_forward_kernel(*refs, n_keys, use_joint, use_motion):
    """Ref layout (in order):
         xs[0..n_keys)                   : (T, BM, Fk)   skeleton streams, frame-major
         wq[0..n_keys)   (if use_joint)  : (T, Fk, CPAD) per-frame joint weights
         wm[0..n_keys)   (if use_motion) : (T, Fk, CPAD) per-frame motion weights
         bias                            : (1, CPAD)
         out                             : (BM, CPAD)
    """
    xs = refs[:n_keys]
    idx = n_keys
    wqs = None
    wms = None
    if use_joint:
        wqs = refs[idx:idx + n_keys]
        idx += n_keys
    if use_motion:
        wms = refs[idx:idx + n_keys]
        idx += n_keys
    b_ref = refs[idx]
    o_ref = refs[idx + 1]

    bm, cpad = o_ref.shape
    acc = jnp.zeros((bm, cpad), jnp.float32)

    for k in range(n_keys):
        x_ref = xs[k]
        t_frames = x_ref.shape[0]
        # Load each frame tile once; reused by both streams (leading-axis indexing only).
        frames = [x_ref[t] for t in range(t_frames)]          # each (BM, Fk)

        if use_joint:
            w_ref = wqs[k]
            for t in range(t_frames):
                acc += jnp.dot(frames[t], w_ref[t],
                               preferred_element_type=jnp.float32)

        if use_motion:
            w_ref = wms[k]
            # motion[:, T-1] == 0 in the reference -> frame T-1 contributes nothing,
            # so it is simply skipped (no zero-filled tensor, no masked store).
            for t in range(t_frames - 1):
                dx = frames[t + 1] - frames[t]
                acc += jnp.dot(dx, w_ref[t],
                               preferred_element_type=jnp.float32)

    if use_joint and use_motion:
        acc = acc * 0.5                      # (f_joint + f_motion) / 2
    o_ref[...] = (acc + b_ref[...]).astype(o_ref.dtype)


def fused_moco_forward(xs, wqs, wms, bias, *, num_class, batch_block=128):
    """xs: per-key (T, B, Fk) f32; wqs/wms: per-key (T, Fk, CPAD) or None;
    bias: (1, CPAD).  Returns (B, num_class) logits."""
    use_joint = wqs is not None
    use_motion = wms is not None
    assert use_joint or use_motion
    t_frames, batch, _ = xs[0].shape
    cpad = bias.shape[1]

    bm = batch if batch <= batch_block else batch_block
    grid = (pl.cdiv(batch, bm),)

    operands = list(xs)
    in_specs = [pl.BlockSpec((t_frames, bm, x.shape[2]), lambda i: (0, i, 0))
                for x in xs]
    for ws in (wqs, wms):
        if ws is not None:
            operands += list(ws)
            in_specs += [pl.BlockSpec(w.shape, lambda i: (0, 0, 0)) for w in ws]
    operands.append(bias)
    in_specs.append(pl.BlockSpec(bias.shape, lambda i: (0, 0)))

    kernel = functools.partial(_fused_forward_kernel, n_keys=len(xs),
                               use_joint=use_joint, use_motion=use_motion)

    out = pl.pallas_call(
        kernel,
        out_shape=jax.ShapeDtypeStruct((batch, cpad), jnp.float32),
        grid=grid,
        in_specs=in_specs,
        out_specs=pl.BlockSpec((bm, cpad), lambda i: (i, 0)),
        compiler_params=pltpu.CompilerParams(
            dimension_semantics=("parallel",)),
    )(*operands)
    return out[:, :num_class]


# --------------------------------------------------------------------------
# Deterministic parameter init (xavier_uniform for dim > 1, zeros for bias),
# mirroring init_para_GCN_Trans.
# --------------------------------------------------------------------------
def xavier_uniform(key, shape, dtype=jnp.float32):
    fan_in, fan_out = shape
    bound = (6.0 / (fan_in + fan_out)) ** 0.5
    return jax.random.uniform(key, shape, dtype, minval=-bound, maxval=bound)


class MoCoPallas:
    """Non-pretrain MoCo forward: motion stream + two encoders + 'all' fusion,
    one fused Pallas kernel per forward call."""

    SKELETON_KEYS = SKELETON_KEYS

    def __init__(self, key, num_frames, skeleton_dims, num_class, pretrain=False):
        assert not pretrain, "only the non-pretrain forward path is implemented"
        self.pretrain = pretrain
        self.num_class = num_class
        self.num_frames = num_frames
        self.key_feat_dims = tuple(skeleton_dims[k][0] * skeleton_dims[k][1]
                                   for k in self.SKELETON_KEYS)
        feat_dim = num_frames * sum(self.key_feat_dims)
        self.cpad = pl.cdiv(num_class, _LANE) * _LANE

        k1, k2 = jax.random.split(key)
        # Full-matrix parameters (kept for the pure-JAX reference check).
        self._wq = xavier_uniform(k1, (feat_dim, num_class))
        self._wm = xavier_uniform(k2, (feat_dim, num_class))
        self._bq = jnp.zeros((num_class,), jnp.float32)
        self._bm = jnp.zeros((num_class,), jnp.float32)

        # Kernel-side parameters: per-key (T, Fk, CPAD) blocks, class dim
        # zero-padded to 128 lanes so the output store is lane-dense.
        self.wq_blocks = self._split_pad(self._wq)
        self.wm_blocks = self._split_pad(self._wm)
        self.bq_pad = self._pad_bias(self._bq)
        self.bm_pad = self._pad_bias(self._bm)
        # view == 'all' folds the average into the epilogue:
        # 0.5*(xWq + bq) + 0.5*(mWm + bm) = 0.5*(acc_q + acc_m) + 0.5*(bq + bm)
        self.b_all_pad = 0.5 * (self.bq_pad + self.bm_pad)

    def _split_pad(self, w_full):
        t = self.num_frames
        blocks, off = [], 0
        for fk in self.key_feat_dims:
            blk = w_full[off:off + t * fk].reshape(t, fk, self.num_class)
            blk = jnp.pad(blk, ((0, 0), (0, 0), (0, self.cpad - self.num_class)))
            blocks.append(blk)
            off += t * fk
        return tuple(blocks)

    def _pad_bias(self, b):
        return jnp.pad(b, (0, self.cpad - self.num_class)).reshape(1, self.cpad)

    def _skeleton_streams(self, im_q):
        # (B, T, V, C) -> (T, B, V*C): frame-major so the kernel only ever
        # indexes the leading axis of each skeleton ref.
        xs = []
        for k in self.SKELETON_KEYS:
            v = im_q[k]
            xs.append(jnp.transpose(v, (1, 0, 2, 3)).reshape(v.shape[1], v.shape[0], -1))
        return tuple(xs)

    def forward(self, im_q, view="joint"):
        # Non-skeleton entries of im_q pass through unchanged in the reference's
        # motion dict; the placeholder encoder only consumes 'rh'/'lh'/'body'.
        xs = self._skeleton_streams(im_q)
        if view == "joint":
            return fused_moco_forward(xs, self.wq_blocks, None, self.bq_pad,
                                      num_class=self.num_class)
        elif view == "motion":
            return fused_moco_forward(xs, None, self.wm_blocks, self.bm_pad,
                                      num_class=self.num_class)
        elif view == "all":
            # TODO(synk): use_dynamic_weighter (DynamicWeighter) branch not implemented.
            return fused_moco_forward(xs, self.wq_blocks, self.wm_blocks,
                                      self.b_all_pad, num_class=self.num_class)
        else:
            raise ValueError(view)

    # ---- pure-JAX reference of the same forward (for verification) ----
    def reference_forward(self, im_q, view="joint"):
        def motion(v):
            m = jnp.zeros_like(v)
            return m.at[:, :-1].set(v[:, 1:] - v[:, :-1])

        def encode(im, w, b):
            x = jnp.concatenate(
                [im[k].reshape(im[k].shape[0], -1) for k in self.SKELETON_KEYS],
                axis=-1)
            return jnp.dot(x, w, precision=jax.lax.Precision.HIGHEST) + b

        im_m = {k: (motion(v) if k in self.SKELETON_KEYS else v)
                for k, v in im_q.items()}
        if view == "joint":
            return encode(im_q, self._wq, self._bq)
        if view == "motion":
            return encode(im_m, self._wm, self._bm)
        if view == "all":
            return (encode(im_q, self._wq, self._bq)
                    + encode(im_m, self._wm, self._bm)) / 2.0
        raise ValueError(view)


# --------------------------------------------------------------------------
if __name__ == "__main__":
    key = jax.random.PRNGKey(0)
    k_rh, k_lh, k_body, k_params = jax.random.split(key, 4)

    B, T = 2, 8
    skeleton_dims = {"rh": (21, 3), "lh": (21, 3), "body": (7, 3)}
    im_q = {
        "rh": jax.random.normal(k_rh, (B, T, 21, 3), jnp.float32),
        "lh": jax.random.normal(k_lh, (B, T, 21, 3), jnp.float32),
        "body": jax.random.normal(k_body, (B, T, 7, 3), jnp.float32),
    }
    num_class = 32

    model = MoCoPallas(k_params, num_frames=T, skeleton_dims=skeleton_dims,
                       num_class=num_class, pretrain=False)

    out_joint = model.forward(im_q, view="joint")
    out_motion = model.forward(im_q, view="motion")
    out_all = model.forward(im_q, view="all")
    jax.block_until_ready((out_joint, out_motion, out_all))

    assert out_joint.shape == (B, num_class)
    assert out_motion.shape == (B, num_class)
    assert out_all.shape == (B, num_class)

    # Numerical check vs. the pure-JAX reference of the same forward.
    for name, got in (("joint", out_joint), ("motion", out_motion), ("all", out_all)):
        want = model.reference_forward(im_q, view=name)
        err = float(jnp.max(jnp.abs(got - want)))
        assert err < 1e-1, f"view={name}: max |err| = {err}"

    print("KERNEL_OK")
</pallas_src>

<mosaic_0001>
module attributes {stable_mosaic.version = 11 : i64} {
  func.func @_fused_forward_kernel(%arg0: i32, %arg1: memref<8x2x63xf32, #tpu.memory_space<vmem>>, %arg2: memref<8x2x63xf32, #tpu.memory_space<vmem>>, %arg3: memref<8x2x21xf32, #tpu.memory_space<vmem>>, %arg4: memref<8x63x128xf32, #tpu.memory_space<vmem>>, %arg5: memref<8x63x128xf32, #tpu.memory_space<vmem>>, %arg6: memref<8x21x128xf32, #tpu.memory_space<vmem>>, %arg7: memref<1x128xf32, #tpu.memory_space<vmem>>, %arg8: memref<2x128xf32, #tpu.memory_space<vmem>>) attributes {dimension_semantics = [#tpu.dimension_semantics<parallel>], iteration_bounds = array<i64: 1>, scalar_prefetch = 0 : i64, scratch_operands = 0 : i64, tpu.core_type = #tpu.core_type<tc>, window_params = [{transform_indices = @transform_0, window_bounds = array<i64: 8, 2, 63>}, {transform_indices = @transform_1, window_bounds = array<i64: 8, 2, 63>}, {transform_indices = @transform_2, window_bounds = array<i64: 8, 2, 21>}, {pipeline_mode = #tpu.pipeline_mode<synchronous>, transform_indices = @transform_3, window_bounds = array<i64: 8, 63, 128>}, {pipeline_mode = #tpu.pipeline_mode<synchronous>, transform_indices = @transform_4, window_bounds = array<i64: 8, 63, 128>}, {pipeline_mode = #tpu.pipeline_mode<synchronous>, transform_indices = @transform_5, window_bounds = array<i64: 8, 21, 128>}, {pipeline_mode = #tpu.pipeline_mode<synchronous>, transform_indices = @transform_6, window_bounds = array<i64: 1, 128>}, {transform_indices = @transform_7, window_bounds = array<i64: 2, 128>}]} {
    %cst = arith.constant 0.000000e+00 : f32
    %0 = vector.broadcast %cst : f32 to vector<2x128xf32>
    %c0 = arith.constant 0 : index
    %c0_0 = arith.constant 0 : index
    %c0_1 = arith.constant 0 : index
    %1 = vector.load %arg1[%c0, %c0_0, %c0_1] : memref<8x2x63xf32, #tpu.memory_space<vmem>>, vector<1x2x63xf32>
    %2 = vector.shape_cast %1 : vector<1x2x63xf32> to vector<2x63xf32>
    %c1 = arith.constant 1 : index
    %c0_2 = arith.constant 0 : index
    %c0_3 = arith.constant 0 : index
    %3 = vector.load %arg1[%c1, %c0_2, %c0_3] : memref<8x2x63xf32, #tpu.memory_space<vmem>>, vector<1x2x63xf32>
    %4 = vector.shape_cast %3 : vector<1x2x63xf32> to vector<2x63xf32>
    %c2 = arith.constant 2 : index
    %c0_4 = arith.constant 0 : index
    %c0_5 = arith.constant 0 : index
    %5 = vector.load %arg1[%c2, %c0_4, %c0_5] : memref<8x2x63xf32, #tpu.memory_space<vmem>>, vector<1x2x63xf32>
    %6 = vector.shape_cast %5 : vector<1x2x63xf32> to vector<2x63xf32>
    %c3 = arith.constant 3 : index
    %c0_6 = arith.constant 0 : index
    %c0_7 = arith.constant 0 : index
    %7 = vector.load %arg1[%c3, %c0_6, %c0_7] : memref<8x2x63xf32, #tpu.memory_space<vmem>>, vector<1x2x63xf32>
    %8 = vector.shape_cast %7 : vector<1x2x63xf32> to vector<2x63xf32>
    %c4 = arith.constant 4 : index
    %c0_8 = arith.constant 0 : index
    %c0_9 = arith.constant 0 : index
    %9 = vector.load %arg1[%c4, %c0_8, %c0_9] : memref<8x2x63xf32, #tpu.memory_space<vmem>>, vector<1x2x63xf32>
    %10 = vector.shape_cast %9 : vector<1x2x63xf32> to vector<2x63xf32>
    %c5 = arith.constant 5 : index
    %c0_10 = arith.constant 0 : index
    %c0_11 = arith.constant 0 : index
    %11 = vector.load %arg1[%c5, %c0_10, %c0_11] : memref<8x2x63xf32, #tpu.memory_space<vmem>>, vector<1x2x63xf32>
    %12 = vector.shape_cast %11 : vector<1x2x63xf32> to vector<2x63xf32>
    %c6 = arith.constant 6 : index
    %c0_12 = arith.constant 0 : index
    %c0_13 = arith.constant 0 : index
    %13 = vector.load %arg1[%c6, %c0_12, %c0_13] : memref<8x2x63xf32, #tpu.memory_space<vmem>>, vector<1x2x63xf32>
    %14 = vector.shape_cast %13 : vector<1x2x63xf32> to vector<2x63xf32>
    %c7 = arith.constant 7 : index
    %c0_14 = arith.constant 0 : index
    %c0_15 = arith.constant 0 : index
    %15 = vector.load %arg1[%c7, %c0_14, %c0_15] : memref<8x2x63xf32, #tpu.memory_space<vmem>>, vector<1x2x63xf32>
    %16 = vector.shape_cast %15 : vector<1x2x63xf32> to vector<2x63xf32>
    %c0_16 = arith.constant 0 : index
    %c0_17 = arith.constant 0 : index
    %c0_18 = arith.constant 0 : index
    %17 = vector.load %arg4[%c0_16, %c0_17, %c0_18] : memref<8x63x128xf32, #tpu.memory_space<vmem>>, vector<1x63x128xf32>
    %18 = vector.shape_cast %17 : vector<1x63x128xf32> to vector<63x128xf32>
    %cst_19 = arith.constant dense<0.000000e+00> : vector<2x128xf32>
    %19 = tpu.matmul %2, %18, %cst_19 {dimension_numbers = #tpu.dot_dimension_numbers<[1], [0], [0], [1], [0, 0, 1, 1], [], []>} : vector<2x63xf32>, vector<63x128xf32>, vector<2x128xf32> -> vector<2x128xf32>
    %20 = arith.addf %0, %19 : vector<2x128xf32>
    %c1_20 = arith.constant 1 : index
    %c0_21 = arith.constant 0 : index
    %c0_22 = arith.constant 0 : index
    %21 = vector.load %arg4[%c1_20, %c0_21, %c0_22] : memref<8x63x128xf32, #tpu.memory_space<vmem>>, vector<1x63x128xf32>
    %22 = vector.shape_cast %21 : vector<1x63x128xf32> to vector<63x128xf32>
    %cst_23 = arith.constant dense<0.000000e+00> : vector<2x128xf32>
    %23 = tpu.matmul %4, %22, %cst_23 {dimension_numbers = #tpu.dot_dimension_numbers<[1], [0], [0], [1], [0, 0, 1, 1], [], []>} : vector<2x63xf32>, vector<63x128xf32>, vector<2x128xf32> -> vector<2x128xf32>
    %24 = arith.addf %20, %23 : vector<2x128xf32>
    %c2_24 = arith.constant 2 : index
    %c0_25 = arith.constant 0 : index
    %c0_26 = arith.constant 0 : index
    %25 = vector.load %arg4[%c2_24, %c0_25, %c0_26] : memref<8x63x128xf32, #tpu.memory_space<vmem>>, vector<1x63x128xf32>
    %26 = vector.shape_cast %25 : vector<1x63x128xf32> to vector<63x128xf32>
    %cst_27 = arith.constant dense<0.000000e+00> : vector<2x128xf32>
    %27 = tpu.matmul %6, %26, %cst_27 {dimension_numbers = #tpu.dot_dimension_numbers<[1], [0], [0], [1], [0, 0, 1, 1], [], []>} : vector<2x63xf32>, vector<63x128xf32>, vector<2x128xf32> -> vector<2x128xf32>
    %28 = arith.addf %24, %27 : vector<2x128xf32>
    %c3_28 = arith.constant 3 : index
    %c0_29 = arith.constant 0 : index
    %c0_30 = arith.constant 0 : index
    %29 = vector.load %arg4[%c3_28, %c0_29, %c0_30] : memref<8x63x128xf32, #tpu.memory_space<vmem>>, vector<1x63x128xf32>
    %30 = vector.shape_cast %29 : vector<1x63x128xf32> to vector<63x128xf32>
    %cst_31 = arith.constant dense<0.000000e+00> : vector<2x128xf32>
    %31 = tpu.matmul %8, %30, %cst_31 {dimension_numbers = #tpu.dot_dimension_numbers<[1], [0], [0], [1], [0, 0, 1, 1], [], []>} : vector<2x63xf32>, vector<63x128xf32>, vector<2x128xf32> -> vector<2x128xf32>
    %32 = arith.addf %28, %31 : vector<2x128xf32>
    %c4_32 = arith.constant 4 : index
    %c0_33 = arith.constant 0 : index
    %c0_34 = arith.constant 0 : index
    %33 = vector.load %arg4[%c4_32, %c0_33, %c0_34] : memref<8x63x128xf32, #tpu.memory_space<vmem>>, vector<1x63x128xf32>
    %34 = vector.shape_cast %33 : vector<1x63x128xf32> to vector<63x128xf32>
    %cst_35 = arith.constant dense<0.000000e+00> : vector<2x128xf32>
    %35 = tpu.matmul %10, %34, %cst_35 {dimension_numbers = #tpu.dot_dimension_numbers<[1], [0], [0], [1], [0, 0, 1, 1], [], []>} : vector<2x63xf32>, vector<63x128xf32>, vector<2x128xf32> -> vector<2x128xf32>
    %36 = arith.addf %32, %35 : vector<2x128xf32>
    %c5_36 = arith.constant 5 : index
    %c0_37 = arith.constant 0 : index
    %c0_38 = arith.constant 0 : index
    %37 = vector.load %arg4[%c5_36, %c0_37, %c0_38] : memref<8x63x128xf32, #tpu.memory_space<vmem>>, vector<1x63x128xf32>
    %38 = vector.shape_cast %37 : vector<1x63x128xf32> to vector<63x128xf32>
    %cst_39 = arith.constant dense<0.000000e+00> : vector<2x128xf32>
    %39 = tpu.matmul %12, %38, %cst_39 {dimension_numbers = #tpu.dot_dimension_numbers<[1], [0], [0], [1], [0, 0, 1, 1], [], []>} : vector<2x63xf32>, vector<63x128xf32>, vector<2x128xf32> -> vector<2x128xf32>
    %40 = arith.addf %36, %39 : vector<2x128xf32>
    %c6_40 = arith.constant 6 : index
    %c0_41 = arith.constant 0 : index
    %c0_42 = arith.constant 0 : index
    %41 = vector.load %arg4[%c6_40, %c0_41, %c0_42] : memref<8x63x128xf32, #tpu.memory_space<vmem>>, vector<1x63x128xf32>
    %42 = vector.shape_cast %41 : vector<1x63x128xf32> to vector<63x128xf32>
    %cst_43 = arith.constant dense<0.000000e+00> : vector<2x128xf32>
    %43 = tpu.matmul %14, %42, %cst_43 {dimension_numbers = #tpu.dot_dimension_numbers<[1], [0], [0], [1], [0, 0, 1, 1], [], []>} : vector<2x63xf32>, vector<63x128xf32>, vector<2x128xf32> -> vector<2x128xf32>
    %44 = arith.addf %40, %43 : vector<2x128xf32>
    %c7_44 = arith.constant 7 : index
    %c0_45 = arith.constant 0 : index
    %c0_46 = arith.constant 0 : index
    %45 = vector.load %arg4[%c7_44, %c0_45, %c0_46] : memref<8x63x128xf32, #tpu.memory_space<vmem>>, vector<1x63x128xf32>
    %46 = vector.shape_cast %45 : vector<1x63x128xf32> to vector<63x128xf32>
    %cst_47 = arith.constant dense<0.000000e+00> : vector<2x128xf32>
    %47 = tpu.matmul %16, %46, %cst_47 {dimension_numbers = #tpu.dot_dimension_numbers<[1], [0], [0], [1], [0, 0, 1, 1], [], []>} : vector<2x63xf32>, vector<63x128xf32>, vector<2x128xf32> -> vector<2x128xf32>
    %48 = arith.addf %44, %47 : vector<2x128xf32>
    %c0_48 = arith.constant 0 : index
    %c0_49 = arith.constant 0 : index
    %c0_50 = arith.constant 0 : index
    %49 = vector.load %arg2[%c0_48, %c0_49, %c0_50] : memref<8x2x63xf32, #tpu.memory_space<vmem>>, vector<1x2x63xf32>
    %50 = vector.shape_cast %49 : vector<1x2x63xf32> to vector<2x63xf32>
    %c1_51 = arith.constant 1 : index
    %c0_52 = arith.constant 0 : index
    %c0_53 = arith.constant 0 : index
    %51 = vector.load %arg2[%c1_51, %c0_52, %c0_53] : memref<8x2x63xf32, #tpu.memory_space<vmem>>, vector<1x2x63xf32>
    %52 = vector.shape_cast %51 : vector<1x2x63xf32> to vector<2x63xf32>
    %c2_54 = arith.constant 2 : index
    %c0_55 = arith.constant 0 : index
    %c0_56 = arith.constant 0 : index
    %53 = vector.load %arg2[%c2_54, %c0_55, %c0_56] : memref<8x2x63xf32, #tpu.memory_space<vmem>>, vector<1x2x63xf32>
    %54 = vector.shape_cast %53 : vector<1x2x63xf32> to vector<2x63xf32>
    %c3_57 = arith.constant 3 : index
    %c0_58 = arith.constant 0 : index
    %c0_59 = arith.constant 0 : index
    %55 = vector.load %arg2[%c3_57, %c0_58, %c0_59] : memref<8x2x63xf32, #tpu.memory_space<vmem>>, vector<1x2x63xf32>
    %56 = vector.shape_cast %55 : vector<1x2x63xf32> to vector<2x63xf32>
    %c4_60 = arith.constant 4 : index
    %c0_61 = arith.constant 0 : index
    %c0_62 = arith.constant 0 : index
    %57 = vector.load %arg2[%c4_60, %c0_61, %c0_62] : memref<8x2x63xf32, #tpu.memory_space<vmem>>, vector<1x2x63xf32>
    %58 = vector.shape_cast %57 : vector<1x2x63xf32> to vector<2x63xf32>
    %c5_63 = arith.constant 5 : index
    %c0_64 = arith.constant 0 : index
    %c0_65 = arith.constant 0 : index
    %59 = vector.load %arg2[%c5_63, %c0_64, %c0_65] : memref<8x2x63xf32, #tpu.memory_space<vmem>>, vector<1x2x63xf32>
    %60 = vector.shape_cast %59 : vector<1x2x63xf32> to vector<2x63xf32>
    %c6_66 = arith.constant 6 : index
    %c0_67 = arith.constant 0 : index
    %c0_68 = arith.constant 0 : index
    %61 = vector.load %arg2[%c6_66, %c0_67, %c0_68] : memref<8x2x63xf32, #tpu.memory_space<vmem>>, vector<1x2x63xf32>
    %62 = vector.shape_cast %61 : vector<1x2x63xf32> to vector<2x63xf32>
    %c7_69 = arith.constant 7 : index
    %c0_70 = arith.constant 0 : index
    %c0_71 = arith.constant 0 : index
    %63 = vector.load %arg2[%c7_69, %c0_70, %c0_71] : memref<8x2x63xf32, #tpu.memory_space<vmem>>, vector<1x2x63xf32>
    %64 = vector.shape_cast %63 : vector<1x2x63xf32> to vector<2x63xf32>
    %c0_72 = arith.constant 0 : index
    %c0_73 = arith.constant 0 : index
    %c0_74 = arith.constant 0 : index
    %65 = vector.load %arg5[%c0_72, %c0_73, %c0_74] : memref<8x63x128xf32, #tpu.memory_space<vmem>>, vector<1x63x128xf32>
    %66 = vector.shape_cast %65 : vector<1x63x128xf32> to vector<63x128xf32>
    %cst_75 = arith.constant dense<0.000000e+00> : vector<2x128xf32>
    %67 = tpu.matmul %50, %66, %cst_75 {dimension_numbers = #tpu.dot_dimension_numbers<[1], [0], [0], [1], [0, 0, 1, 1], [], []>} : vector<2x63xf32>, vector<63x128xf32>, vector<2x128xf32> -> vector<2x128xf32>
    %68 = arith.addf %48, %67 : vector<2x128xf32>
    %c1_76 = arith.constant 1 : index
    %c0_77 = arith.constant 0 : index
    %c0_78 = arith.constant 0 : index
    %69 = vector.load %arg5[%c1_76, %c0_77, %c0_78] : memref<8x63x128xf32, #tpu.memory_space<vmem>>, vector<1x63x128xf32>
    %70 = vector.shape_cast %69 : vector<1x63x128xf32> to vector<63x128xf32>
    %cst_79 = arith.constant dense<0.000000e+00> : vector<2x128xf32>
    %71 = tpu.matmul %52, %70, %cst_79 {dimension_numbers = #tpu.dot_dimension_numbers<[1], [0], [0], [1], [0, 0, 1, 1], [], []>} : vector<2x63xf32>, vector<63x128xf32>, vector<2x128xf32> -> vector<2x128xf32>
    %72 = arith.addf %68, %71 : vector<2x128xf32>
    %c2_80 = arith.constant 2 : index
    %c0_81 = arith.constant 0 : index
    %c0_82 = arith.constant 0 : index
    %73 = vector.load %arg5[%c2_80, %c0_81, %c0_82] : memref<8x63x128xf32, #tpu.memory_space<vmem>>, vector<1x63x128xf32>
    %74 = vector.shape_cast %73 : vector<1x63x128xf32> to vector<63x128xf32>
    %cst_83 = arith.constant dense<0.000000e+00> : vector<2x128xf32>
    %75 = tpu.matmul %54, %74, %cst_83 {dimension_numbers = #tpu.dot_dimension_numbers<[1], [0], [0], [1], [0, 0, 1, 1], [], []>} : vector<2x63xf32>, vector<63x128xf32>, vector<2x128xf32> -> vector<2x128xf32>
    %76 = arith.addf %72, %75 : vector<2x128xf32>
    %c3_84 = arith.constant 3 : index
    %c0_85 = arith.constant 0 : index
    %c0_86 = arith.constant 0 : index
    %77 = vector.load %arg5[%c3_84, %c0_85, %c0_86] : memref<8x63x128xf32, #tpu.memory_space<vmem>>, vector<1x63x128xf32>
    %78 = vector.shape_cast %77 : vector<1x63x128xf32> to vector<63x128xf32>
    %cst_87 = arith.constant dense<0.000000e+00> : vector<2x128xf32>
    %79 = tpu.matmul %56, %78, %cst_87 {dimension_numbers = #tpu.dot_dimension_numbers<[1], [0], [0], [1], [0, 0, 1, 1], [], []>} : vector<2x63xf32>, vector<63x128xf32>, vector<2x128xf32> -> vector<2x128xf32>
    %80 = arith.addf %76, %79 : vector<2x128xf32>
    %c4_88 = arith.constant 4 : index
    %c0_89 = arith.constant 0 : index
    %c0_90 = arith.constant 0 : index
    %81 = vector.load %arg5[%c4_88, %c0_89, %c0_90] : memref<8x63x128xf32, #tpu.memory_space<vmem>>, vector<1x63x128xf32>
    %82 = vector.shape_cast %81 : vector<1x63x128xf32> to vector<63x128xf32>
    %cst_91 = arith.constant dense<0.000000e+00> : vector<2x128xf32>
    %83 = tpu.matmul %58, %82, %cst_91 {dimension_numbers = #tpu.dot_dimension_numbers<[1], [0], [0], [1], [0, 0, 1, 1], [], []>} : vector<2x63xf32>, vector<63x128xf32>, vector<2x128xf32> -> vector<2x128xf32>
    %84 = arith.addf %80, %83 : vector<2x128xf32>
    %c5_92 = arith.constant 5 : index
    %c0_93 = arith.constant 0 : index
    %c0_94 = arith.constant 0 : index
    %85 = vector.load %arg5[%c5_92, %c0_93, %c0_94] : memref<8x63x128xf32, #tpu.memory_space<vmem>>, vector<1x63x128xf32>
    %86 = vector.shape_cast %85 : vector<1x63x128xf32> to vector<63x128xf32>
    %cst_95 = arith.constant dense<0.000000e+00> : vector<2x128xf32>
    %87 = tpu.matmul %60, %86, %cst_95 {dimension_numbers = #tpu.dot_dimension_numbers<[1], [0], [0], [1], [0, 0, 1, 1], [], []>} : vector<2x63xf32>, vector<63x128xf32>, vector<2x128xf32> -> vector<2x128xf32>
    %88 = arith.addf %84, %87 : vector<2x128xf32>
    %c6_96 = arith.constant 6 : index
    %c0_97 = arith.constant 0 : index
    %c0_98 = arith.constant 0 : index
    %89 = vector.load %arg5[%c6_96, %c0_97, %c0_98] : memref<8x63x128xf32, #tpu.memory_space<vmem>>, vector<1x63x128xf32>
    %90 = vector.shape_cast %89 : vector<1x63x128xf32> to vector<63x128xf32>
    %cst_99 = arith.constant dense<0.000000e+00> : vector<2x128xf32>
    %91 = tpu.matmul %62, %90, %cst_99 {dimension_numbers = #tpu.dot_dimension_numbers<[1], [0], [0], [1], [0, 0, 1, 1], [], []>} : vector<2x63xf32>, vector<63x128xf32>, vector<2x128xf32> -> vector<2x128xf32>
    %92 = arith.addf %88, %91 : vector<2x128xf32>
    %c7_100 = arith.constant 7 : index
    %c0_101 = arith.constant 0 : index
    %c0_102 = arith.constant 0 : index
    %93 = vector.load %arg5[%c7_100, %c0_101, %c0_102] : memref<8x63x128xf32, #tpu.memory_space<vmem>>, vector<1x63x128xf32>
    %94 = vector.shape_cast %93 : vector<1x63x128xf32> to vector<63x128xf32>
    %cst_103 = arith.constant dense<0.000000e+00> : vector<2x128xf32>
    %95 = tpu.matmul %64, %94, %cst_103 {dimension_numbers = #tpu.dot_dimension_numbers<[1], [0], [0], [1], [0, 0, 1, 1], [], []>} : vector<2x63xf32>, vector<63x128xf32>, vector<2x128xf32> -> vector<2x128xf32>
    %96 = arith.addf %92, %95 : vector<2x128xf32>
    %c0_104 = arith.constant 0 : index
    %c0_105 = arith.constant 0 : index
    %c0_106 = arith.constant 0 : index
    %97 = vector.load %arg3[%c0_104, %c0_105, %c0_106] : memref<8x2x21xf32, #tpu.memory_space<vmem>>, vector<1x2x21xf32>
    %98 = vector.shape_cast %97 : vector<1x2x21xf32> to vector<2x21xf32>
    %c1_107 = arith.constant 1 : index
    %c0_108 = arith.constant 0 : index
    %c0_109 = arith.constant 0 : index
    %99 = vector.load %arg3[%c1_107, %c0_108, %c0_109] : memref<8x2x21xf32, #tpu.memory_space<vmem>>, vector<1x2x21xf32>
    %100 = vector.shape_cast %99 : vector<1x2x21xf32> to vector<2x21xf32>
    %c2_110 = arith.constant 2 : index
    %c0_111 = arith.constant 0 : index
    %c0_112 = arith.constant 0 : index
    %101 = vector.load %arg3[%c2_110, %c0_111, %c0_112] : memref<8x2x21xf32, #tpu.memory_space<vmem>>, vector<1x2x21xf32>
    %102 = vector.shape_cast %101 : vector<1x2x21xf32> to vector<2x21xf32>
    %c3_113 = arith.constant 3 : index
    %c0_114 = arith.constant 0 : index
    %c0_115 = arith.constant 0 : index
    %103 = vector.load %arg3[%c3_113, %c0_114, %c0_115] : memref<8x2x21xf32, #tpu.memory_space<vmem>>, vector<1x2x21xf32>
    %104 = vector.shape_cast %103 : vector<1x2x21xf32> to vector<2x21xf32>
    %c4_116 = arith.constant 4 : index
    %c0_117 = arith.constant 0 : index
    %c0_118 = arith.constant 0 : index
    %105 = vector.load %arg3[%c4_116, %c0_117, %c0_118] : memref<8x2x21xf32, #tpu.memory_space<vmem>>, vector<1x2x21xf32>
    %106 = vector.shape_cast %105 : vector<1x2x21xf32> to vector<2x21xf32>
    %c5_119 = arith.constant 5 : index
    %c0_120 = arith.constant 0 : index
    %c0_121 = arith.constant 0 : index
    %107 = vector.load %arg3[%c5_119, %c0_120, %c0_121] : memref<8x2x21xf32, #tpu.memory_space<vmem>>, vector<1x2x21xf32>
    %108 = vector.shape_cast %107 : vector<1x2x21xf32> to vector<2x21xf32>
    %c6_122 = arith.constant 6 : index
    %c0_123 = arith.constant 0 : index
    %c0_124 = arith.constant 0 : index
    %109 = vector.load %arg3[%c6_122, %c0_123, %c0_124] : memref<8x2x21xf32, #tpu.memory_space<vmem>>, vector<1x2x21xf32>
    %110 = vector.shape_cast %109 : vector<1x2x21xf32> to vector<2x21xf32>
    %c7_125 = arith.constant 7 : index
    %c0_126 = arith.constant 0 : index
    %c0_127 = arith.constant 0 : index
    %111 = vector.load %arg3[%c7_125, %c0_126, %c0_127] : memref<8x2x21xf32, #tpu.memory_space<vmem>>, vector<1x2x21xf32>
    %112 = vector.shape_cast %111 : vector<1x2x21xf32> to vector<2x21xf32>
    %c0_128 = arith.constant 0 : index
    %c0_129 = arith.constant 0 : index
    %c0_130 = arith.constant 0 : index
    %113 = vector.load %arg6[%c0_128, %c0_129, %c0_130] : memref<8x21x128xf32, #tpu.memory_space<vmem>>, vector<1x21x128xf32>
    %114 = vector.shape_cast %113 : vector<1x21x128xf32> to vector<21x128xf32>
    %cst_131 = arith.constant dense<0.000000e+00> : vector<2x128xf32>
    %115 = tpu.matmul %98, %114, %cst_131 {dimension_numbers = #tpu.dot_dimension_numbers<[1], [0], [0], [1], [0, 0, 1, 1], [], []>} : vector<2x21xf32>, vector<21x128xf32>, vector<2x128xf32> -> vector<2x128xf32>
    %116 = arith.addf %96, %115 : vector<2x128xf32>
    %c1_132 = arith.constant 1 : index
    %c0_133 = arith.constant 0 : index
    %c0_134 = arith.constant 0 : index
    %117 = vector.load %arg6[%c1_132, %c0_133, %c0_134] : memref<8x21x128xf32, #tpu.memory_space<vmem>>, vector<1x21x128xf32>
    %118 = vector.shape_cast %117 : vector<1x21x128xf32> to vector<21x128xf32>
    %cst_135 = arith.constant dense<0.000000e+00> : vector<2x128xf32>
    %119 = tpu.matmul %100, %118, %cst_135 {dimension_numbers = #tpu.dot_dimension_numbers<[1], [0], [0], [1], [0, 0, 1, 1], [], []>} : vector<2x21xf32>, vector<21x128xf32>, vector<2x128xf32> -> vector<2x128xf32>
    %120 = arith.addf %116, %119 : vector<2x128xf32>
    %c2_136 = arith.constant 2 : index
    %c0_137 = arith.constant 0 : index
    %c0_138 = arith.constant 0 : index
    %121 = vector.load %arg6[%c2_136, %c0_137, %c0_138] : memref<8x21x128xf32, #tpu.memory_space<vmem>>, vector<1x21x128xf32>
    %122 = vector.shape_cast %121 : vector<1x21x128xf32> to vector<21x128xf32>
    %cst_139 = arith.constant dense<0.000000e+00> : vector<2x128xf32>
    %123 = tpu.matmul %102, %122, %cst_139 {dimension_numbers = #tpu.dot_dimension_numbers<[1], [0], [0], [1], [0, 0, 1, 1], [], []>} : vector<2x21xf32>, vector<21x128xf32>, vector<2x128xf32> -> vector<2x128xf32>
    %124 = arith.addf %120, %123 : vector<2x128xf32>
    %c3_140 = arith.constant 3 : index
    %c0_141 = arith.constant 0 : index
    %c0_142 = arith.constant 0 : index
    %125 = vector.load %arg6[%c3_140, %c0_141, %c0_142] : memref<8x21x128xf32, #tpu.memory_space<vmem>>, vector<1x21x128xf32>
    %126 = vector.shape_cast %125 : vector<1x21x128xf32> to vector<21x128xf32>
    %cst_143 = arith.constant dense<0.000000e+00> : vector<2x128xf32>
    %127 = tpu.matmul %104, %126, %cst_143 {dimension_numbers = #tpu.dot_dimension_numbers<[1], [0], [0], [1], [0, 0, 1, 1], [], []>} : vector<2x21xf32>, vector<21x128xf32>, vector<2x128xf32> -> vector<2x128xf32>
    %128 = arith.addf %124, %127 : vector<2x128xf32>
    %c4_144 = arith.constant 4 : index
    %c0_145 = arith.constant 0 : index
    %c0_146 = arith.constant 0 : index
    %129 = vector.load %arg6[%c4_144, %c0_145, %c0_146] : memref<8x21x128xf32, #tpu.memory_space<vmem>>, vector<1x21x128xf32>
    %130 = vector.shape_cast %129 : vector<1x21x128xf32> to vector<21x128xf32>
    %cst_147 = arith.constant dense<0.000000e+00> : vector<2x128xf32>
    %131 = tpu.matmul %106, %130, %cst_147 {dimension_numbers = #tpu.dot_dimension_numbers<[1], [0], [0], [1], [0, 0, 1, 1], [], []>} : vector<2x21xf32>, vector<21x128xf32>, vector<2x128xf32> -> vector<2x128xf32>
    %132 = arith.addf %128, %131 : vector<2x128xf32>
    %c5_148 = arith.constant 5 : index
    %c0_149 = arith.constant 0 : index
    %c0_150 = arith.constant 0 : index
    %133 = vector.load %arg6[%c5_148, %c0_149, %c0_150] : memref<8x21x128xf32, #tpu.memory_space<vmem>>, vector<1x21x128xf32>
    %134 = vector.shape_cast %133 : vector<1x21x128xf32> to vector<21x128xf32>
    %cst_151 = arith.constant dense<0.000000e+00> : vector<2x128xf32>
    %135 = tpu.matmul %108, %134, %cst_151 {dimension_numbers = #tpu.dot_dimension_numbers<[1], [0], [0], [1], [0, 0, 1, 1], [], []>} : vector<2x21xf32>, vector<21x128xf32>, vector<2x128xf32> -> vector<2x128xf32>
    %136 = arith.addf %132, %135 : vector<2x128xf32>
    %c6_152 = arith.constant 6 : index
    %c0_153 = arith.constant 0 : index
    %c0_154 = arith.constant 0 : index
    %137 = vector.load %arg6[%c6_152, %c0_153, %c0_154] : memref<8x21x128xf32, #tpu.memory_space<vmem>>, vector<1x21x128xf32>
    %138 = vector.shape_cast %137 : vector<1x21x128xf32> to vector<21x128xf32>
    %cst_155 = arith.constant dense<0.000000e+00> : vector<2x128xf32>
    %139 = tpu.matmul %110, %138, %cst_155 {dimension_numbers = #tpu.dot_dimension_numbers<[1], [0], [0], [1], [0, 0, 1, 1], [], []>} : vector<2x21xf32>, vector<21x128xf32>, vector<2x128xf32> -> vector<2x128xf32>
    %140 = arith.addf %136, %139 : vector<2x128xf32>
    %c7_156 = arith.constant 7 : index
    %c0_157 = arith.constant 0 : index
    %c0_158 = arith.constant 0 : index
    %141 = vector.load %arg6[%c7_156, %c0_157, %c0_158] : memref<8x21x128xf32, #tpu.memory_space<vmem>>, vector<1x21x128xf32>
    %142 = vector.shape_cast %141 : vector<1x21x128xf32> to vector<21x128xf32>
    %cst_159 = arith.constant dense<0.000000e+00> : vector<2x128xf32>
    %143 = tpu.matmul %112, %142, %cst_159 {dimension_numbers = #tpu.dot_dimension_numbers<[1], [0], [0], [1], [0, 0, 1, 1], [], []>} : vector<2x21xf32>, vector<21x128xf32>, vector<2x128xf32> -> vector<2x128xf32>
    %144 = arith.addf %140, %143 : vector<2x128xf32>
    %c0_160 = arith.constant 0 : index
    %c0_161 = arith.constant 0 : index
    %145 = vector.load %arg7[%c0_160, %c0_161] : memref<1x128xf32, #tpu.memory_space<vmem>>, vector<1x128xf32>
    %146 = vector.broadcast %145 : vector<1x128xf32> to vector<2x128xf32>
    %147 = arith.addf %144, %146 : vector<2x128xf32>
    %c0_162 = arith.constant 0 : index
    %c0_163 = arith.constant 0 : index
    %148 = vector.load %arg8[%c0_162, %c0_163] : memref<2x128xf32, #tpu.memory_space<vmem>>, vector<2x128xf32>
    tpu.vector_store %arg8[%c0_162, %c0_163], %147 {strides = array<i32>} : memref<2x128xf32, #tpu.memory_space<vmem>>, vector<2x128xf32>,
    return
  }
  func.func @transform_0(%arg0: i32) -> (i32, i32, i32) {
    %c0_i32 = arith.constant 0 : i32
    %c0_i32_0 = arith.constant 0 : i32
    %c0_i32_1 = arith.constant 0 : i32
    return %c0_i32, %arg0, %c0_i32_0 : i32, i32, i32
  }
  func.func @transform_1(%arg0: i32) -> (i32, i32, i32) {
    %c0_i32 = arith.constant 0 : i32
    %c0_i32_0 = arith.constant 0 : i32
    %c0_i32_1 = arith.constant 0 : i32
    return %c0_i32, %arg0, %c0_i32_0 : i32, i32, i32
  }
  func.func @transform_2(%arg0: i32) -> (i32, i32, i32) {
    %c0_i32 = arith.constant 0 : i32
    %c0_i32_0 = arith.constant 0 : i32
    %c0_i32_1 = arith.constant 0 : i32
    return %c0_i32, %arg0, %c0_i32_0 : i32, i32, i32
  }
  func.func @transform_3(%arg0: i32) -> (i32, i32, i32) {
    %c0_i32 = arith.constant 0 : i32
    %c0_i32_0 = arith.constant 0 : i32
    %c0_i32_1 = arith.constant 0 : i32
    %c0_i32_2 = arith.constant 0 : i32
    return %c0_i32, %c0_i32_0, %c0_i32_1 : i32, i32, i32
  }
  func.func @transform_4(%arg0: i32) -> (i32, i32, i32) {
    %c0_i32 = arith.constant 0 : i32
    %c0_i32_0 = arith.constant 0 : i32
    %c0_i32_1 = arith.constant 0 : i32
    %c0_i32_2 = arith.constant 0 : i32
    return %c0_i32, %c0_i32_0, %c0_i32_1 : i32, i32, i32
  }
  func.func @transform_5(%arg0: i32) -> (i32, i32, i32) {
    %c0_i32 = arith.constant 0 : i32
    %c0_i32_0 = arith.constant 0 : i32
    %c0_i32_1 = arith.constant 0 : i32
    %c0_i32_2 = arith.constant 0 : i32
    return %c0_i32, %c0_i32_0, %c0_i32_1 : i32, i32, i32
  }
  func.func @transform_6(%arg0: i32) -> (i32, i32) {
    %c0_i32 = arith.constant 0 : i32
    %c0_i32_0 = arith.constant 0 : i32
    %c0_i32_1 = arith.constant 0 : i32
    return %c0_i32, %c0_i32_0 : i32, i32
  }
  func.func @transform_7(%arg0: i32) -> (i32, i32) {
    %c0_i32 = arith.constant 0 : i32
    %c0_i32_0 = arith.constant 0 : i32
    return %arg0, %c0_i32 : i32, i32
  }
}

</mosaic_0001>

<llo_original>
// kernel: tpu_custom_call.1
$region0: #{tpu_custom_call.1}
  #allocation0 [shape = 'u32[]', space=smem, size = 0x4, offset = 0x4, fixed_abs, tag = 'smem constant byte address 0x4 - core index']
  #allocation1 [shape = 'u32[144,128]{1,0:T(1,128)}', space=vmem, size = 0x12000, scoped, tag = 'internal scratch']
  %s0 = inlined_call_operand.vmem [shape: f32[8,2,63], index: 0, kind: input, shape index: {}]
  %s1 = inlined_call_operand.vmem [shape: f32[8,2,63], index: 1, kind: input, shape index: {}]
  %s2 = inlined_call_operand.vmem [shape: f32[8,2,21], index: 2, kind: input, shape index: {}]
  %s3 = inlined_call_operand.vmem [shape: f32[8,63,128], index: 3, kind: input, shape index: {}]
  %s4 = inlined_call_operand.vmem [shape: f32[8,63,128], index: 4, kind: input, shape index: {}]
  %s5 = inlined_call_operand.vmem [shape: f32[8,21,128], index: 5, kind: input, shape index: {}]
  %s6 = inlined_call_operand.vmem [shape: f32[1,128], index: 6, kind: input, shape index: {}]
  %s7 = inlined_call_operand.hbm [shape: f32[2,128], index: 7, kind: output, shape index: {}]
  %s8 = sld [smem:[#allocation0]]
  $region38: #{tpu_custom_call.1} parent=0
    _
  %s10 = ssub.s32 1, %s8
  %s11 = scalar_select 0, %s10, %s8
  $region1: #{tpu_custom_call.1} parent=0
    #allocation2 [shape = 'u8[1024]{0}', space=vmem, size = 0x400, scoped, tag = 'output window, operand 0, single buffered']
    #allocation3 [shape = 's32[1]{0}', space=sflag, size = 0x4, scoped, tag = 'scoped memory for tpu_custom_call.1']
    %12 = vsyncpa [#allocation3], 0
    // Predicated region
    $region2: #{tpu_custom_call.1} parent=1 // pred_check
      _
    $region3: #{tpu_custom_call.1} parent=1 // pred_check_branch
      %14 = sbr.rel (0) target = $region5
    $region4: #{tpu_custom_call.1} parent=1 // pred_region
      _
    $region5: #{tpu_custom_call.1} parent=1 // pred_fallthru
      _
    // Predicated region
    $region6: #{tpu_custom_call.1} parent=1 // pred_check
      _
    $region7: #{tpu_custom_call.1} parent=1 // pred_check_branch
      %16 = sbr.rel (0) target = $region9
    $region8: #{tpu_custom_call.1} parent=1 // pred_region
      _
    $region9: #{tpu_custom_call.1} parent=1 // pred_fallthru
      _
    // Predicated region
    $region10: #{tpu_custom_call.1} parent=1 // pred_check
      _
    $region11: #{tpu_custom_call.1} parent=1 // pred_check_branch
      %18 = sbr.rel (0) target = $region13
    $region12: #{tpu_custom_call.1} parent=1 // pred_region
      _
    $region13: #{tpu_custom_call.1} parent=1 // pred_fallthru
      _
    // Predicated region
    $region14: #{tpu_custom_call.1} parent=1 // pred_check
      _
    $region15: #{tpu_custom_call.1} parent=1 // pred_check_branch
      %20 = sbr.rel (0) target = $region17
    $region16: #{tpu_custom_call.1} parent=1 // pred_region
      _
    $region17: #{tpu_custom_call.1} parent=1 // pred_fallthru
      _
    // Predicated region
    $region18: #{tpu_custom_call.1} parent=1 // pred_check
      _
    $region19: #{tpu_custom_call.1} parent=1 // pred_check_branch
      %22 = sbr.rel (0) target = $region21
    $region20: #{tpu_custom_call.1} parent=1 // pred_region
      _
    $region21: #{tpu_custom_call.1} parent=1 // pred_fallthru
      _
    // Predicated region
    $region22: #{tpu_custom_call.1} parent=1 // pred_check
      _
    $region23: #{tpu_custom_call.1} parent=1 // pred_check_branch
      %24 = sbr.rel (0) target = $region25
    $region24: #{tpu_custom_call.1} parent=1 // pred_region
      _
    $region25: #{tpu_custom_call.1} parent=1 // pred_fallthru
      _
    // Predicated region
    $region26: #{tpu_custom_call.1} parent=1 // pred_check
      _
    $region27: #{tpu_custom_call.1} parent=1 // pred_check_branch
      %26 = sbr.rel (0) target = $region29
    $region28: #{tpu_custom_call.1} parent=1 // pred_region
      _
    $region29: #{tpu_custom_call.1} parent=1 // pred_fallthru
      _
    %v27 = vld [vmem:[%s0] sm:$0x3]
    %s28 = scalar_lea.vmem %s0, 2
    %v29 = vld [vmem:[%s28] sm:$0x3]
    %s30 = scalar_lea.vmem %s0, 4
    %v31 = vld [vmem:[%s30] sm:$0x3]
    %s32 = scalar_lea.vmem %s0, 6
    %v33 = vld [vmem:[%s32] sm:$0x3]
    %s34 = scalar_lea.vmem %s0, 8
    %v35 = vld [vmem:[%s34] sm:$0x3]
    %s36 = scalar_lea.vmem %s0, 10
    %v37 = vld [vmem:[%s36] sm:$0x3]
    %s38 = scalar_lea.vmem %s0, 12
    %v39 = vld [vmem:[%s38] sm:$0x3]
    %s40 = scalar_lea.vmem %s0, 14
    %v41 = vld [vmem:[%s40] sm:$0x3]
    %v42 = vld [vmem:[%s3] sm:$0xff]
    %v43 = vld [vmem:[%s3 + $0x8] sm:$0xff]
    %v44 = vld [vmem:[%s3 + $0x10] sm:$0xff]
    %v45 = vld [vmem:[%s3 + $0x18] sm:$0xff]
    %v46 = vld [vmem:[%s3 + $0x20] sm:$0xff]
    %v47 = vld [vmem:[%s3 + $0x28] sm:$0xff]
    %v48 = vld [vmem:[%s3 + $0x30] sm:$0xff]
    %v49 = vld [vmem:[%s3 + $0x38] sm:$0x7f]
    %s50 = scalar_lea.vmem %s3, 64
    %v51 = vld [vmem:[%s50] sm:$0xff]
    %v52 = vld [vmem:[%s50 + $0x8] sm:$0xff]
    %v53 = vld [vmem:[%s50 + $0x10] sm:$0xff]
    %v54 = vld [vmem:[%s50 + $0x18] sm:$0xff]
    %v55 = vld [vmem:[%s50 + $0x20] sm:$0xff]
    %v56 = vld [vmem:[%s50 + $0x28] sm:$0xff]
    %v57 = vld [vmem:[%s50 + $0x30] sm:$0xff]
    %v58 = vld [vmem:[%s50 + $0x38] sm:$0x7f]
    %vm59 = vcmask 515072
    %v61 = vsel %vm59, %v29, 0
    %vm63 = vcmask 1046528
    %v65 = vsel %vm63, %v58, 0
    %67 = vmatprep.subr.mxu0 0.0
    %68 = vmatpush1.msra.mxu0 %v51
    %69 = vmatprep.subr.mxu0 0.0
    %70 = vmatpush1.msra.mxu0 %v52
    %71 = vmatprep.subr.mxu0 0.0
    %72 = vmatpush1.msra.mxu0 %v53
    %73 = vmatprep.subr.mxu0 0.0
    %74 = vmatpush1.msra.mxu0 %v54
    %75 = vmatprep.subr.mxu0 0.0
    %76 = vmatpush1.msra.mxu0 %v55
    %77 = vmatprep.subr.mxu0 0.0
    %78 = vmatpush1.msra.mxu0 %v56
    %79 = vmatprep.subr.mxu0 0.0
    %80 = vmatpush1.msra.mxu0 %v57
    %81 = vmatprep.subr.mxu0 0.0
    %82 = vmatpush1.msra.mxu0 %v65
    %83 = vmatprep.subr.mxu0 0.0
    %84 = vmatpush1.msra.mxu0 0.0
    %85 = vmatprep.subr.mxu0 0.0
    %86 = vmatpush1.msra.mxu0 0.0
    %87 = vmatprep.subr.mxu0 0.0
    %88 = vmatpush1.msra.mxu0 0.0
    %89 = vmatprep.subr.mxu0 0.0
    %90 = vmatpush1.msra.mxu0 0.0
    %91 = vmatprep.subr.mxu0 0.0
    %92 = vmatpush1.msra.mxu0 0.0
    %93 = vmatprep.subr.mxu0 0.0
    %94 = vmatpush1.msra.mxu0 0.0
    %95 = vmatprep.subr.mxu0 0.0
    %96 = vmatpush1.msra.mxu0 0.0
    %97 = vmatprep.subr.mxu0 0.0
    %98 = vmatpush1.msra.mxu0 0.0
    %99 = vmatprep.subr.mxu0 0.0
    %100 = vmatpush1.msra.mxu0 0.0
    %101 = vmatprep.subr.mxu0 0.0
    %102 = vmatpush1.msra.mxu0 0.0
    %103 = vmatprep.subr.mxu0 0.0
    %104 = vmatpush1.msra.mxu0 0.0
    %105 = vmatprep.subr.mxu0 0.0
    %106 = vmatpush1.msra.mxu0 0.0
    %107 = vmatprep.subr.mxu0 0.0
    %108 = vmatpush1.msra.mxu0 0.0
    %109 = vmatprep.subr.mxu0 0.0
    %110 = vmatpush1.msra.mxu0 0.0
    %111 = vmatprep.subr.mxu0 0.0
    %112 = vmatpush1.msra.mxu0 0.0
    %113 = vmatprep.subr.mxu0 0.0
    %114 = vmatpush1.msra.mxu0 0.0
    %115 = vmatprep.subr.mxu0 0.0
    %116 = vmatpush1.msra.mxu0 0.0
    %117 = vmatprep.subr.mxu0 0.0
    %118 = vmatpush1.msra.mxu0 0.0
    %119 = vmatprep.subr.mxu0 0.0
    %120 = vmatpush1.msra.mxu0 0.0
    %121 = vmatprep.subr.mxu0 0.0
    %122 = vmatpush1.msra.mxu0 0.0
    %123 = vmatprep.subr.mxu0 0.0
    %124 = vmatpush1.msra.mxu0 0.0
    %125 = vmatprep.subr.mxu0 0.0
    %126 = vmatpush1.msra.mxu0 0.0
    %127 = vmatprep.subr.mxu0 0.0
    %128 = vmatpush1.msra.mxu0 0.0
    %129 = vmatprep.subr.mxu0 0.0
    %130 = vmatpush1.msra.mxu0 0.0
    %131 = vmatprep.mubr.f32.mxu0 0.0
    %132 = vmatmul.mubr.f32.gmra.mrb[0].mxu0 %v61
    %v133 = vpop.f32.mrb[0].mxu0
    %v134 = vadd.f32 0.0, %v133
    %v135 = vpop.f32.mrb[0].mxu0
    %136 = vdwg.mxu0
    %v138 = vsel %vm59, %v27, 0
    %v141 = vsel %vm63, %v49, 0
    %143 = vmatprep.subr.mxu0 0.0
    %144 = vmatpush1.msra.mxu0 %v42
    %145 = vmatprep.subr.mxu0 0.0
    %146 = vmatpush1.msra.mxu0 %v43
    %147 = vmatprep.subr.mxu0 0.0
    %148 = vmatpush1.msra.mxu0 %v44
    %149 = vmatprep.subr.mxu0 0.0
    %150 = vmatpush1.msra.mxu0 %v45
    %151 = vmatprep.subr.mxu0 0.0
    %152 = vmatpush1.msra.mxu0 %v46
    %153 = vmatprep.subr.mxu0 0.0
    %154 = vmatpush1.msra.mxu0 %v47
    %155 = vmatprep.subr.mxu0 0.0
    %156 = vmatpush1.msra.mxu0 %v48
    %157 = vmatprep.subr.mxu0 0.0
    %158 = vmatpush1.msra.mxu0 %v141
    %159 = vmatprep.subr.mxu0 0.0
    %160 = vmatpush1.msra.mxu0 0.0
    %161 = vmatprep.subr.mxu0 0.0
    %162 = vmatpush1.msra.mxu0 0.0
    %163 = vmatprep.subr.mxu0 0.0
    %164 = vmatpush1.msra.mxu0 0.0
    %165 = vmatprep.subr.mxu0 0.0
    %166 = vmatpush1.msra.mxu0 0.0
    %167 = vmatprep.subr.mxu0 0.0
    %168 = vmatpush1.msra.mxu0 0.0
    %169 = vmatprep.subr.mxu0 0.0
    %170 = vmatpush1.msra.mxu0 0.0
    %171 = vmatprep.subr.mxu0 0.0
    %172 = vmatpush1.msra.mxu0 0.0
    %173 = vmatprep.subr.mxu0 0.0
    %174 = vmatpush1.msra.mxu0 0.0
    %175 = vmatprep.subr.mxu0 0.0
    %176 = vmatpush1.msra.mxu0 0.0
    %177 = vmatprep.subr.mxu0 0.0
    %178 = vmatpush1.msra.mxu0 0.0
    %179 = vmatprep.subr.mxu0 0.0
    %180 = vmatpush1.msra.mxu0 0.0
    %181 = vmatprep.subr.mxu0 0.0
    %182 = vmatpush1.msra.mxu0 0.0
    %183 = vmatprep.subr.mxu0 0.0
    %184 = vmatpush1.msra.mxu0 0.0
    %185 = vmatprep.subr.mxu0 0.0
    %186 = vmatpush1.msra.mxu0 0.0
    %187 = vmatprep.subr.mxu0 0.0
    %188 = vmatpush1.msra.mxu0 0.0
    %189 = vmatprep.subr.mxu0 0.0
    %190 = vmatpush1.msra.mxu0 0.0
    %191 = vmatprep.subr.mxu0 0.0
    %192 = vmatpush1.msra.mxu0 0.0
    %193 = vmatprep.subr.mxu0 0.0
    %194 = vmatpush1.msra.mxu0 0.0
    %195 = vmatprep.subr.mxu0 0.0
    %196 = vmatpush1.msra.mxu0 0.0
    %197 = vmatprep.subr.mxu0 0.0
    %198 = vmatpush1.msra.mxu0 0.0
    %199 = vmatprep.subr.mxu0 0.0
    %200 = vmatpush1.msra.mxu0 0.0
    %201 = vmatprep.subr.mxu0 0.0
    %202 = vmatpush1.msra.mxu0 0.0
    %203 = vmatprep.subr.mxu0 0.0
    %204 = vmatpush1.msra.mxu0 0.0
    %205 = vmatprep.subr.mxu0 0.0
    %206 = vmatpush1.msra.mxu0 0.0
    %207 = vmatprep.mubr.f32.mxu0 0.0
    %208 = vmatmul.mubr.f32.gmra.mrb[0].mxu0 %v138
    %v209 = vpop.f32.mrb[0].mxu0
    %v210 = vadd.f32 %v134, %v209
    %v211 = vpop.f32.mrb[0].mxu0
    %212 = vdwg.mxu0
    %s213 = scalar_lea.vmem %s3, 128
    %v214 = vld [vmem:[%s213] sm:$0xff]
    %v215 = vld [vmem:[%s213 + $0x8] sm:$0xff]
    %v216 = vld [vmem:[%s213 + $0x10] sm:$0xff]
    %v217 = vld [vmem:[%s213 + $0x18] sm:$0xff]
    %v218 = vld [vmem:[%s213 + $0x20] sm:$0xff]
    %v219 = vld [vmem:[%s213 + $0x28] sm:$0xff]
    %v220 = vld [vmem:[%s213 + $0x30] sm:$0xff]
    %v221 = vld [vmem:[%s213 + $0x38] sm:$0x7f]
    %v223 = vsel %vm59, %v31, 0
    %v226 = vsel %vm63, %v221, 0
    %228 = vmatprep.subr.mxu0 0.0
    %229 = vmatpush1.msra.mxu0 %v214
    %230 = vmatprep.subr.mxu0 0.0
    %231 = vmatpush1.msra.mxu0 %v215
    %232 = vmatprep.subr.mxu0 0.0
    %233 = vmatpush1.msra.mxu0 %v216
    %234 = vmatprep.subr.mxu0 0.0
    %235 = vmatpush1.msra.mxu0 %v217
    %236 = vmatprep.subr.mxu0 0.0
    %237 = vmatpush1.msra.mxu0 %v218
    %238 = vmatprep.subr.mxu0 0.0
    %239 = vmatpush1.msra.mxu0 %v219
    %240 = vmatprep.subr.mxu0 0.0
    %241 = vmatpush1.msra.mxu0 %v220
    %242 = vmatprep.subr.mxu0 0.0
    %243 = vmatpush1.msra.mxu0 %v226
    %244 = vmatprep.subr.mxu0 0.0
    %245 = vmatpush1.msra.mxu0 0.0
    %246 = vmatprep.subr.mxu0 0.0
    %247 = vmatpush1.msra.mxu0 0.0
    %248 = vmatprep.subr.mxu0 0.0
    %249 = vmatpush1.msra.mxu0 0.0
    %250 = vmatprep.subr.mxu0 0.0
    %251 = vmatpush1.msra.mxu0 0.0
    %252 = vmatprep.subr.mxu0 0.0
    %253 = vmatpush1.msra.mxu0 0.0
    %254 = vmatprep.subr.mxu0 0.0
    %255 = vmatpush1.msra.mxu0 0.0
    %256 = vmatprep.subr.mxu0 0.0
    %257 = vmatpush1.msra.mxu0 0.0
    %258 = vmatprep.subr.mxu0 0.0
    %259 = vmatpush1.msra.mxu0 0.0
    %260 = vmatprep.subr.mxu0 0.0
    %261 = vmatpush1.msra.mxu0 0.0
    %262 = vmatprep.subr.mxu0 0.0
    %263 = vmatpush1.msra.mxu0 0.0
    %264 = vmatprep.subr.mxu0 0.0
    %265 = vmatpush1.msra.mxu0 0.0
    %266 = vmatprep.subr.mxu0 0.0
    %267 = vmatpush1.msra.mxu0 0.0
    %268 = vmatprep.subr.mxu0 0.0
    %269 = vmatpush1.msra.mxu0 0.0
    %270 = vmatprep.subr.mxu0 0.0
    %271 = vmatpush1.msra.mxu0 0.0
    %272 = vmatprep.subr.mxu0 0.0
    %273 = vmatpush1.msra.mxu0 0.0
    %274 = vmatprep.subr.mxu0 0.0
    %275 = vmatpush1.msra.mxu0 0.0
    %276 = vmatprep.subr.mxu0 0.0
    %277 = vmatpush1.msra.mxu0 0.0
    %278 = vmatprep.subr.mxu0 0.0
    %279 = vmatpush1.msra.mxu0 0.0
    %280 = vmatprep.subr.mxu0 0.0
    %281 = vmatpush1.msra.mxu0 0.0
    %282 = vmatprep.subr.mxu0 0.0
    %283 = vmatpush1.msra.mxu0 0.0
    %284 = vmatprep.subr.mxu0 0.0
    %285 = vmatpush1.msra.mxu0 0.0
    %286 = vmatprep.subr.mxu0 0.0
    %287 = vmatpush1.msra.mxu0 0.0
    %288 = vmatprep.subr.mxu0 0.0
    %289 = vmatpush1.msra.mxu0 0.0
    %290 = vmatprep.subr.mxu0 0.0
    %291 = vmatpush1.msra.mxu0 0.0
    %292 = vmatprep.mubr.f32.mxu0 0.0
    %293 = vmatmul.mubr.f32.gmra.mrb[0].mxu0 %v223
    %v294 = vpop.f32.mrb[0].mxu0
    %v295 = vadd.f32 0.0, %v294
    %v296 = vpop.f32.mrb[0].mxu0
    %297 = vdwg.mxu0
    %v298 = vadd.f32 %v210, %v295
    %s299 = scalar_lea.vmem %s3, 192
    %v300 = vld [vmem:[%s299] sm:$0xff]
    %v301 = vld [vmem:[%s299 + $0x8] sm:$0xff]
    %v302 = vld [vmem:[%s299 + $0x10] sm:$0xff]
    %v303 = vld [vmem:[%s299 + $0x18] sm:$0xff]
    %v304 = vld [vmem:[%s299 + $0x20] sm:$0xff]
    %v305 = vld [vmem:[%s299 + $0x28] sm:$0xff]
    %v306 = vld [vmem:[%s299 + $0x30] sm:$0xff]
    %v307 = vld [vmem:[%s299 + $0x38] sm:$0x7f]
    %v309 = vsel %vm59, %v33, 0
    %v312 = vsel %vm63, %v307, 0
    %314 = vmatprep.subr.mxu0 0.0
    %315 = vmatpush1.msra.mxu0 %v300
    %316 = vmatprep.subr.mxu0 0.0
    %317 = vmatpush1.msra.mxu0 %v301
    %318 = vmatprep.subr.mxu0 0.0
    %319 = vmatpush1.msra.mxu0 %v302
    %320 = vmatprep.subr.mxu0 0.0
    %321 = vmatpush1.msra.mxu0 %v303
    %322 = vmatprep.subr.mxu0 0.0
    %323 = vmatpush1.msra.mxu0 %v304
    %324 = vmatprep.subr.mxu0 0.0
    %325 = vmatpush1.msra.mxu0 %v305
    %326 = vmatprep.subr.mxu0 0.0
    %327 = vmatpush1.msra.mxu0 %v306
    %328 = vmatprep.subr.mxu0 0.0
    %329 = vmatpush1.msra.mxu0 %v312
    %330 = vmatprep.subr.mxu0 0.0
    %331 = vmatpush1.msra.mxu0 0.0
    %332 = vmatprep.subr.mxu0 0.0
    %333 = vmatpush1.msra.mxu0 0.0
    %334 = vmatprep.subr.mxu0 0.0
    %335 = vmatpush1.msra.mxu0 0.0
    %336 = vmatprep.subr.mxu0 0.0
    %337 = vmatpush1.msra.mxu0 0.0
    %338 = vmatprep.subr.mxu0 0.0
    %339 = vmatpush1.msra.mxu0 0.0
    %340 = vmatprep.subr.mxu0 0.0
    %341 = vmatpush1.msra.mxu0 0.0
    %342 = vmatprep.subr.mxu0 0.0
    %343 = vmatpush1.msra.mxu0 0.0
    %344 = vmatprep.subr.mxu0 0.0
    %345 = vmatpush1.msra.mxu0 0.0
    %346 = vmatprep.subr.mxu0 0.0
    %347 = vmatpush1.msra.mxu0 0.0
    %348 = vmatprep.subr.mxu0 0.0
    %349 = vmatpush1.msra.mxu0 0.0
    %350 = vmatprep.subr.mxu0 0.0
    %351 = vmatpush1.msra.mxu0 0.0
    %352 = vmatprep.subr.mxu0 0.0
    %353 = vmatpush1.msra.mxu0 0.0
    %354 = vmatprep.subr.mxu0 0.0
    %355 = vmatpush1.msra.mxu0 0.0
    %356 = vmatprep.subr.mxu0 0.0
    %357 = vmatpush1.msra.mxu0 0.0
    %358 = vmatprep.subr.mxu0 0.0
    %359 = vmatpush1.msra.mxu0 0.0
    %360 = vmatprep.subr.mxu0 0.0
    %361 = vmatpush1.msra.mxu0 0.0
    %362 = vmatprep.subr.mxu0 0.0
    %363 = vmatpush1.msra.mxu0 0.0
    %364 = vmatprep.subr.mxu0 0.0
    %365 = vmatpush1.msra.mxu0 0.0
    %366 = vmatprep.subr.mxu0 0.0
    %367 = vmatpush1.msra.mxu0 0.0
    %368 = vmatprep.subr.mxu0 0.0
    %369 = vmatpush1.msra.mxu0 0.0
    %370 = vmatprep.subr.mxu0 0.0
    %371 = vmatpush1.msra.mxu0 0.0
    %372 = vmatprep.subr.mxu0 0.0
    %373 = vmatpush1.msra.mxu0 0.0
    %374 = vmatprep.subr.mxu0 0.0
    %375 = vmatpush1.msra.mxu0 0.0
    %376 = vmatprep.subr.mxu0 0.0
    %377 = vmatpush1.msra.mxu0 0.0
    %378 = vmatprep.mubr.f32.mxu0 0.0
    %379 = vmatmul.mubr.f32.gmra.mrb[0].mxu0 %v309
    %v380 = vpop.f32.mrb[0].mxu0
    %v381 = vadd.f32 0.0, %v380
    %v382 = vpop.f32.mrb[0].mxu0
    %383 = vdwg.mxu0
    %v384 = vadd.f32 %v298, %v381
    %s385 = scalar_lea.vmem %s3, 256
    %v386 = vld [vmem:[%s385] sm:$0xff]
    %v387 = vld [vmem:[%s385 + $0x8] sm:$0xff]
    %v388 = vld [vmem:[%s385 + $0x10] sm:$0xff]
    %v389 = vld [vmem:[%s385 + $0x18] sm:$0xff]
    %v390 = vld [vmem:[%s385 + $0x20] sm:$0xff]
    %v391 = vld [vmem:[%s385 + $0x28] sm:$0xff]
    %v392 = vld [vmem:[%s385 + $0x30] sm:$0xff]
    %v393 = vld [vmem:[%s385 + $0x38] sm:$0x7f]
    %v395 = vsel %vm59, %v35, 0
    %v398 = vsel %vm63, %v393, 0
    %400 = vmatprep.subr.mxu0 0.0
    %401 = vmatpush1.msra.mxu0 %v386
    %402 = vmatprep.subr.mxu0 0.0
    %403 = vmatpush1.msra.mxu0 %v387
    %404 = vmatprep.subr.mxu0 0.0
    %405 = vmatpush1.msra.mxu0 %v388
    %406 = vmatprep.subr.mxu0 0.0
    %407 = vmatpush1.msra.mxu0 %v389
    %408 = vmatprep.subr.mxu0 0.0
    %409 = vmatpush1.msra.mxu0 %v390
    %410 = vmatprep.subr.mxu0 0.0
    %411 = vmatpush1.msra.mxu0 %v391
    %412 = vmatprep.subr.mxu0 0.0
    %413 = vmatpush1.msra.mxu0 %v392
    %414 = vmatprep.subr.mxu0 0.0
    %415 = vmatpush1.msra.mxu0 %v398
    %416 = vmatprep.subr.mxu0 0.0
    %417 = vmatpush1.msra.mxu0 0.0
    %418 = vmatprep.subr.mxu0 0.0
    %419 = vmatpush1.msra.mxu0 0.0
    %420 = vmatprep.subr.mxu0 0.0
    %421 = vmatpush1.msra.mxu0 0.0
    %422 = vmatprep.subr.mxu0 0.0
    %423 = vmatpush1.msra.mxu0 0.0
    %424 = vmatprep.subr.mxu0 0.0
    %425 = vmatpush1.msra.mxu0 0.0
    %426 = vmatprep.subr.mxu0 0.0
    %427 = vmatpush1.msra.mxu0 0.0
    %428 = vmatprep.subr.mxu0 0.0
    %429 = vmatpush1.msra.mxu0 0.0
    %430 = vmatprep.subr.mxu0 0.0
    %431 = vmatpush1.msra.mxu0 0.0
    %432 = vmatprep.subr.mxu0 0.0
    %433 = vmatpush1.msra.mxu0 0.0
    %434 = vmatprep.subr.mxu0 0.0
    %435 = vmatpush1.msra.mxu0 0.0
    %436 = vmatprep.subr.mxu0 0.0
    %437 = vmatpush1.msra.mxu0 0.0
    %438 = vmatprep.subr.mxu0 0.0
    %439 = vmatpush1.msra.mxu0 0.0
    %440 = vmatprep.subr.mxu0 0.0
    %441 = vmatpush1.msra.mxu0 0.0
    %442 = vmatprep.subr.mxu0 0.0
    %443 = vmatpush1.msra.mxu0 0.0
    %444 = vmatprep.subr.mxu0 0.0
    %445 = vmatpush1.msra.mxu0 0.0
    %446 = vmatprep.subr.mxu0 0.0
    %447 = vmatpush1.msra.mxu0 0.0
    %448 = vmatprep.subr.mxu0 0.0
    %449 = vmatpush1.msra.mxu0 0.0
    %450 = vmatprep.subr.mxu0 0.0
    %451 = vmatpush1.msra.mxu0 0.0
    %452 = vmatprep.subr.mxu0 0.0
    %453 = vmatpush1.msra.mxu0 0.0
    %454 = vmatprep.subr.mxu0 0.0
    %455 = vmatpush1.msra.mxu0 0.0
    %456 = vmatprep.subr.mxu0 0.0
    %457 = vmatpush1.msra.mxu0 0.0
    %458 = vmatprep.subr.mxu0 0.0
    %459 = vmatpush1.msra.mxu0 0.0
    %460 = vmatprep.subr.mxu0 0.0
    %461 = vmatpush1.msra.mxu0 0.0
    %462 = vmatprep.subr.mxu0 0.0
    %463 = vmatpush1.msra.mxu0 0.0
    %464 = vmatprep.mubr.f32.mxu0 0.0
    %465 = vmatmul.mubr.f32.gmra.mrb[0].mxu0 %v395
    %v466 = vpop.f32.mrb[0].mxu0
    %v467 = vadd.f32 0.0, %v466
    %v468 = vpop.f32.mrb[0].mxu0
    %469 = vdwg.mxu0
    %v470 = vadd.f32 %v384, %v467
    %s471 = scalar_lea.vmem %s3, 320
    %v472 = vld [vmem:[%s471] sm:$0xff]
    %v473 = vld [vmem:[%s471 + $0x8] sm:$0xff]
    %v474 = vld [vmem:[%s471 + $0x10] sm:$0xff]
    %v475 = vld [vmem:[%s471 + $0x18] sm:$0xff]
    %v476 = vld [vmem:[%s471 + $0x20] sm:$0xff]
    %v477 = vld [vmem:[%s471 + $0x28] sm:$0xff]
    %v478 = vld [vmem:[%s471 + $0x30] sm:$0xff]
    %v479 = vld [vmem:[%s471 + $0x38] sm:$0x7f]
    %v481 = vsel %vm59, %v37, 0
    %v484 = vsel %vm63, %v479, 0
    %486 = vmatprep.subr.mxu0 0.0
    %487 = vmatpush1.msra.mxu0 %v472
    %488 = vmatprep.subr.mxu0 0.0
    %489 = vmatpush1.msra.mxu0 %v473
    %490 = vmatprep.subr.mxu0 0.0
    %491 = vmatpush1.msra.mxu0 %v474
    %492 = vmatprep.subr.mxu0 0.0
    %493 = vmatpush1.msra.mxu0 %v475
    %494 = vmatprep.subr.mxu0 0.0
    %495 = vmatpush1.msra.mxu0 %v476
    %496 = vmatprep.subr.mxu0 0.0
    %497 = vmatpush1.msra.mxu0 %v477
    %498 = vmatprep.subr.mxu0 0.0
    %499 = vmatpush1.msra.mxu0 %v478
    %500 = vmatprep.subr.mxu0 0.0
    %501 = vmatpush1.msra.mxu0 %v484
    %502 = vmatprep.subr.mxu0 0.0
    %503 = vmatpush1.msra.mxu0 0.0
    %504 = vmatprep.subr.mxu0 0.0
    %505 = vmatpush1.msra.mxu0 0.0
    %506 = vmatprep.subr.mxu0 0.0
    %507 = vmatpush1.msra.mxu0 0.0
    %508 = vmatprep.subr.mxu0 0.0
    %509 = vmatpush1.msra.mxu0 0.0
    %510 = vmatprep.subr.mxu0 0.0
    %511 = vmatpush1.msra.mxu0 0.0
    %512 = vmatprep.subr.mxu0 0.0
    %513 = vmatpush1.msra.mxu0 0.0
    %514 = vmatprep.subr.mxu0 0.0
    %515 = vmatpush1.msra.mxu0 0.0
    %516 = vmatprep.subr.mxu0 0.0
    %517 = vmatpush1.msra.mxu0 0.0
    %518 = vmatprep.subr.mxu0 0.0
    %519 = vmatpush1.msra.mxu0 0.0
    %520 = vmatprep.subr.mxu0 0.0
    %521 = vmatpush1.msra.mxu0 0.0
    %522 = vmatprep.subr.mxu0 0.0
    %523 = vmatpush1.msra.mxu0 0.0
    %524 = vmatprep.subr.mxu0 0.0
    %525 = vmatpush1.msra.mxu0 0.0
    %526 = vmatprep.subr.mxu0 0.0
    %527 = vmatpush1.msra.mxu0 0.0
    %528 = vmatprep.subr.mxu0 0.0
    %529 = vmatpush1.msra.mxu0 0.0
    %530 = vmatprep.subr.mxu0 0.0
    %531 = vmatpush1.msra.mxu0 0.0
    %532 = vmatprep.subr.mxu0 0.0
    %533 = vmatpush1.msra.mxu0 0.0
    %534 = vmatprep.subr.mxu0 0.0
    %535 = vmatpush1.msra.mxu0 0.0
    %536 = vmatprep.subr.mxu0 0.0
    %537 = vmatpush1.msra.mxu0 0.0
    %538 = vmatprep.subr.mxu0 0.0
    %539 = vmatpush1.msra.mxu0 0.0
    %540 = vmatprep.subr.mxu0 0.0
    %541 = vmatpush1.msra.mxu0 0.0
    %542 = vmatprep.subr.mxu0 0.0
    %543 = vmatpush1.msra.mxu0 0.0
    %544 = vmatprep.subr.mxu0 0.0
    %545 = vmatpush1.msra.mxu0 0.0
    %546 = vmatprep.subr.mxu0 0.0
    %547 = vmatpush1.msra.mxu0 0.0
    %548 = vmatprep.subr.mxu0 0.0
    %549 = vmatpush1.msra.mxu0 0.0
    %550 = vmatprep.mubr.f32.mxu0 0.0
    %551 = vmatmul.mubr.f32.gmra.mrb[0].mxu0 %v481
    %v552 = vpop.f32.mrb[0].mxu0
    %v553 = vadd.f32 0.0, %v552
    %v554 = vpop.f32.mrb[0].mxu0
    %555 = vdwg.mxu0
    %v556 = vadd.f32 %v470, %v553
    %s557 = scalar_lea.vmem %s3, 384
    %v558 = vld [vmem:[%s557] sm:$0xff]
    %v559 = vld [vmem:[%s557 + $0x8] sm:$0xff]
    %v560 = vld [vmem:[%s557 + $0x10] sm:$0xff]
    %v561 = vld [vmem:[%s557 + $0x18] sm:$0xff]
    %v562 = vld [vmem:[%s557 + $0x20] sm:$0xff]
    %v563 = vld [vmem:[%s557 + $0x28] sm:$0xff]
    %v564 = vld [vmem:[%s557 + $0x30] sm:$0xff]
    %v565 = vld [vmem:[%s557 + $0x38] sm:$0x7f]
    %v567 = vsel %vm59, %v39, 0
    %v570 = vsel %vm63, %v565, 0
    %572 = vmatprep.subr.mxu0 0.0
    %573 = vmatpush1.msra.mxu0 %v558
    %574 = vmatprep.subr.mxu0 0.0
    %575 = vmatpush1.msra.mxu0 %v559
    %576 = vmatprep.subr.mxu0 0.0
    %577 = vmatpush1.msra.mxu0 %v560
    %578 = vmatprep.subr.mxu0 0.0
    %579 = vmatpush1.msra.mxu0 %v561
    %580 = vmatprep.subr.mxu0 0.0
    %581 = vmatpush1.msra.mxu0 %v562
    %582 = vmatprep.subr.mxu0 0.0
    %583 = vmatpush1.msra.mxu0 %v563
    %584 = vmatprep.subr.mxu0 0.0
    %585 = vmatpush1.msra.mxu0 %v564
    %586 = vmatprep.subr.mxu0 0.0
    %587 = vmatpush1.msra.mxu0 %v570
    %588 = vmatprep.subr.mxu0 0.0
    %589 = vmatpush1.msra.mxu0 0.0
    %590 = vmatprep.subr.mxu0 0.0
    %591 = vmatpush1.msra.mxu0 0.0
    %592 = vmatprep.subr.mxu0 0.0
    %593 = vmatpush1.msra.mxu0 0.0
    %594 = vmatprep.subr.mxu0 0.0
    %595 = vmatpush1.msra.mxu0 0.0
    %596 = vmatprep.subr.mxu0 0.0
    %597 = vmatpush1.msra.mxu0 0.0
    %598 = vmatprep.subr.mxu0 0.0
    %599 = vmatpush1.msra.mxu0 0.0
    %600 = vmatprep.subr.mxu0 0.0
    %601 = vmatpush1.msra.mxu0 0.0
    %602 = vmatprep.subr.mxu0 0.0
    %603 = vmatpush1.msra.mxu0 0.0
    %604 = vmatprep.subr.mxu0 0.0
    %605 = vmatpush1.msra.mxu0 0.0
    %606 = vmatprep.subr.mxu0 0.0
    %607 = vmatpush1.msra.mxu0 0.0
    %608 = vmatprep.subr.mxu0 0.0
    %609 = vmatpush1.msra.mxu0 0.0
    %610 = vmatprep.subr.mxu0 0.0
    %611 = vmatpush1.msra.mxu0 0.0
    %612 = vmatprep.subr.mxu0 0.0
    %613 = vmatpush1.msra.mxu0 0.0
    %614 = vmatprep.subr.mxu0 0.0
    %615 = vmatpush1.msra.mxu0 0.0
    %616 = vmatprep.subr.mxu0 0.0
    %617 = vmatpush1.msra.mxu0 0.0
    %618 = vmatprep.subr.mxu0 0.0
    %619 = vmatpush1.msra.mxu0 0.0
    %620 = vmatprep.subr.mxu0 0.0
    %621 = vmatpush1.msra.mxu0 0.0
    %622 = vmatprep.subr.mxu0 0.0
    %623 = vmatpush1.msra.mxu0 0.0
    %624 = vmatprep.subr.mxu0 0.0
    %625 = vmatpush1.msra.mxu0 0.0
    %626 = vmatprep.subr.mxu0 0.0
    %627 = vmatpush1.msra.mxu0 0.0
    %628 = vmatprep.subr.mxu0 0.0
    %629 = vmatpush1.msra.mxu0 0.0
    %630 = vmatprep.subr.mxu0 0.0
    %631 = vmatpush1.msra.mxu0 0.0
    %632 = vmatprep.subr.mxu0 0.0
    %633 = vmatpush1.msra.mxu0 0.0
    %634 = vmatprep.subr.mxu0 0.0
    %635 = vmatpush1.msra.mxu0 0.0
    %636 = vmatprep.mubr.f32.mxu0 0.0
    %637 = vmatmul.mubr.f32.gmra.mrb[0].mxu0 %v567
    %v638 = vpop.f32.mrb[0].mxu0
    %v639 = vadd.f32 0.0, %v638
    %v640 = vpop.f32.mrb[0].mxu0
    %641 = vdwg.mxu0
    %v642 = vadd.f32 %v556, %v639
    %s643 = scalar_lea.vmem %s3, 448
    %v644 = vld [vmem:[%s643] sm:$0xff]
    %v645 = vld [vmem:[%s643 + $0x8] sm:$0xff]
    %v646 = vld [vmem:[%s643 + $0x10] sm:$0xff]
    %v647 = vld [vmem:[%s643 + $0x18] sm:$0xff]
    %v648 = vld [vmem:[%s643 + $0x20] sm:$0xff]
    %v649 = vld [vmem:[%s643 + $0x28] sm:$0xff]
    %v650 = vld [vmem:[%s643 + $0x30] sm:$0xff]
    %v651 = vld [vmem:[%s643 + $0x38] sm:$0x7f]
    %v653 = vsel %vm59, %v41, 0
    %v656 = vsel %vm63, %v651, 0
    %658 = vmatprep.subr.mxu0 0.0
    %659 = vmatpush1.msra.mxu0 %v644
    %660 = vmatprep.subr.mxu0 0.0
    %661 = vmatpush1.msra.mxu0 %v645
    %662 = vmatprep.subr.mxu0 0.0
    %663 = vmatpush1.msra.mxu0 %v646
    %664 = vmatprep.subr.mxu0 0.0
    %665 = vmatpush1.msra.mxu0 %v647
    %666 = vmatprep.subr.mxu0 0.0
    %667 = vmatpush1.msra.mxu0 %v648
    %668 = vmatprep.subr.mxu0 0.0
    %669 = vmatpush1.msra.mxu0 %v649
    %670 = vmatprep.subr.mxu0 0.0
    %671 = vmatpush1.msra.mxu0 %v650
    %672 = vmatprep.subr.mxu0 0.0
    %673 = vmatpush1.msra.mxu0 %v656
    %674 = vmatprep.subr.mxu0 0.0
    %675 = vmatpush1.msra.mxu0 0.0
    %676 = vmatprep.subr.mxu0 0.0
    %677 = vmatpush1.msra.mxu0 0.0
    %678 = vmatprep.subr.mxu0 0.0
    %679 = vmatpush1.msra.mxu0 0.0
    %680 = vmatprep.subr.mxu0 0.0
    %681 = vmatpush1.msra.mxu0 0.0
    %682 = vmatprep.subr.mxu0 0.0
    %683 = vmatpush1.msra.mxu0 0.0
    %684 = vmatprep.subr.mxu0 0.0
    %685 = vmatpush1.msra.mxu0 0.0
    %686 = vmatprep.subr.mxu0 0.0
    %687 = vmatpush1.msra.mxu0 0.0
    %688 = vmatprep.subr.mxu0 0.0
    %689 = vmatpush1.msra.mxu0 0.0
    %690 = vmatprep.subr.mxu0 0.0
    %691 = vmatpush1.msra.mxu0 0.0
    %692 = vmatprep.subr.mxu0 0.0
    %693 = vmatpush1.msra.mxu0 0.0
    %694 = vmatprep.subr.mxu0 0.0
    %695 = vmatpush1.msra.mxu0 0.0
    %696 = vmatprep.subr.mxu0 0.0
    %697 = vmatpush1.msra.mxu0 0.0
    %698 = vmatprep.subr.mxu0 0.0
    %699 = vmatpush1.msra.mxu0 0.0
    %700 = vmatprep.subr.mxu0 0.0
    %701 = vmatpush1.msra.mxu0 0.0
    %702 = vmatprep.subr.mxu0 0.0
    %703 = vmatpush1.msra.mxu0 0.0
    %704 = vmatprep.subr.mxu0 0.0
    %705 = vmatpush1.msra.mxu0 0.0
    %706 = vmatprep.subr.mxu0 0.0
    %707 = vmatpush1.msra.mxu0 0.0
    %708 = vmatprep.subr.mxu0 0.0
    %709 = vmatpush1.msra.mxu0 0.0
    %710 = vmatprep.subr.mxu0 0.0
    %711 = vmatpush1.msra.mxu0 0.0
    %712 = vmatprep.subr.mxu0 0.0
    %713 = vmatpush1.msra.mxu0 0.0
    %714 = vmatprep.subr.mxu0 0.0
    %715 = vmatpush1.msra.mxu0 0.0
    %716 = vmatprep.subr.mxu0 0.0
    %717 = vmatpush1.msra.mxu0 0.0
    %718 = vmatprep.subr.mxu0 0.0
    %719 = vmatpush1.msra.mxu0 0.0
    %720 = vmatprep.subr.mxu0 0.0
    %721 = vmatpush1.msra.mxu0 0.0
    %722 = vmatprep.mubr.f32.mxu0 0.0
    %723 = vmatmul.mubr.f32.gmra.mrb[0].mxu0 %v653
    %v724 = vpop.f32.mrb[0].mxu0
    %v725 = vadd.f32 0.0, %v724
    %v726 = vpop.f32.mrb[0].mxu0
    %727 = vdwg.mxu0
    %v728 = vadd.f32 %v642, %v725
    %v729 = vld [vmem:[%s1] sm:$0x3]
    %s730 = scalar_lea.vmem %s1, 2
    %v731 = vld [vmem:[%s730] sm:$0x3]
    %s732 = scalar_lea.vmem %s1, 4
    %v733 = vld [vmem:[%s732] sm:$0x3]
    %s734 = scalar_lea.vmem %s1, 6
    %v735 = vld [vmem:[%s734] sm:$0x3]
    %s736 = scalar_lea.vmem %s1, 8
    %v737 = vld [vmem:[%s736] sm:$0x3]
    %s738 = scalar_lea.vmem %s1, 10
    %v739 = vld [vmem:[%s738] sm:$0x3]
    %s740 = scalar_lea.vmem %s1, 12
    %v741 = vld [vmem:[%s740] sm:$0x3]
    %s742 = scalar_lea.vmem %s1, 14
    %v743 = vld [vmem:[%s742] sm:$0x3]
    %v744 = vld [vmem:[%s4] sm:$0xff]
    %v745 = vld [vmem:[%s4 + $0x8] sm:$0xff]
    %v746 = vld [vmem:[%s4 + $0x10] sm:$0xff]
    %v747 = vld [vmem:[%s4 + $0x18] sm:$0xff]
    %v748 = vld [vmem:[%s4 + $0x20] sm:$0xff]
    %v749 = vld [vmem:[%s4 + $0x28] sm:$0xff]
    %v750 = vld [vmem:[%s4 + $0x30] sm:$0xff]
    %v751 = vld [vmem:[%s4 + $0x38] sm:$0x7f]
    %v753 = vsel %vm59, %v729, 0
    %v756 = vsel %vm63, %v751, 0
    %758 = vmatprep.subr.mxu0 0.0
    %759 = vmatpush1.msra.mxu0 %v744
    %760 = vmatprep.subr.mxu0 0.0
    %761 = vmatpush1.msra.mxu0 %v745
    %762 = vmatprep.subr.mxu0 0.0
    %763 = vmatpush1.msra.mxu0 %v746
    %764 = vmatprep.subr.mxu0 0.0
    %765 = vmatpush1.msra.mxu0 %v747
    %766 = vmatprep.subr.mxu0 0.0
    %767 = vmatpush1.msra.mxu0 %v748
    %768 = vmatprep.subr.mxu0 0.0
    %769 = vmatpush1.msra.mxu0 %v749
    %770 = vmatprep.subr.mxu0 0.0
    %771 = vmatpush1.msra.mxu0 %v750
    %772 = vmatprep.subr.mxu0 0.0
    %773 = vmatpush1.msra.mxu0 %v756
    %774 = vmatprep.subr.mxu0 0.0
    %775 = vmatpush1.msra.mxu0 0.0
    %776 = vmatprep.subr.mxu0 0.0
    %777 = vmatpush1.msra.mxu0 0.0
    %778 = vmatprep.subr.mxu0 0.0
    %779 = vmatpush1.msra.mxu0 0.0
    %780 = vmatprep.subr.mxu0 0.0
    %781 = vmatpush1.msra.mxu0 0.0
    %782 = vmatprep.subr.mxu0 0.0
    %783 = vmatpush1.msra.mxu0 0.0
    %784 = vmatprep.subr.mxu0 0.0
    %785 = vmatpush1.msra.mxu0 0.0
    %786 = vmatprep.subr.mxu0 0.0
    %787 = vmatpush1.msra.mxu0 0.0
    %788 = vmatprep.subr.mxu0 0.0
    %789 = vmatpush1.msra.mxu0 0.0
    %790 = vmatprep.subr.mxu0 0.0
    %791 = vmatpush1.msra.mxu0 0.0
    %792 = vmatprep.subr.mxu0 0.0
    %793 = vmatpush1.msra.mxu0 0.0
    %794 = vmatprep.subr.mxu0 0.0
    %795 = vmatpush1.msra.mxu0 0.0
    %796 = vmatprep.subr.mxu0 0.0
    %797 = vmatpush1.msra.mxu0 0.0
    %798 = vmatprep.subr.mxu0 0.0
    %799 = vmatpush1.msra.mxu0 0.0
    %800 = vmatprep.subr.mxu0 0.0
    %801 = vmatpush1.msra.mxu0 0.0
    %802 = vmatprep.subr.mxu0 0.0
    %803 = vmatpush1.msra.mxu0 0.0
    %804 = vmatprep.subr.mxu0 0.0
    %805 = vmatpush1.msra.mxu0 0.0
    %806 = vmatprep.subr.mxu0 0.0
    %807 = vmatpush1.msra.mxu0 0.0
    %808 = vmatprep.subr.mxu0 0.0
    %809 = vmatpush1.msra.mxu0 0.0
    %810 = vmatprep.subr.mxu0 0.0
    %811 = vmatpush1.msra.mxu0 0.0
    %812 = vmatprep.subr.mxu0 0.0
    %813 = vmatpush1.msra.mxu0 0.0
    %814 = vmatprep.subr.mxu0 0.0
    %815 = vmatpush1.msra.mxu0 0.0
    %816 = vmatprep.subr.mxu0 0.0
    %817 = vmatpush1.msra.mxu0 0.0
    %818 = vmatprep.subr.mxu0 0.0
    %819 = vmatpush1.msra.mxu0 0.0
    %820 = vmatprep.subr.mxu0 0.0
    %821 = vmatpush1.msra.mxu0 0.0
    %822 = vmatprep.mubr.f32.mxu0 0.0
    %823 = vmatmul.mubr.f32.gmra.mrb[0].mxu0 %v753
    %v824 = vpop.f32.mrb[0].mxu0
    %v825 = vadd.f32 0.0, %v824
    %v826 = vpop.f32.mrb[0].mxu0
    %827 = vdwg.mxu0
    %v828 = vadd.f32 %v728, %v825
    %s829 = scalar_lea.vmem %s4, 64
    %v830 = vld [vmem:[%s829] sm:$0xff]
    %v831 = vld [vmem:[%s829 + $0x8] sm:$0xff]
    %v832 = vld [vmem:[%s829 + $0x10] sm:$0xff]
    %v833 = vld [vmem:[%s829 + $0x18] sm:$0xff]
    %v834 = vld [vmem:[%s829 + $0x20] sm:$0xff]
    %v835 = vld [vmem:[%s829 + $0x28] sm:$0xff]
    %v836 = vld [vmem:[%s829 + $0x30] sm:$0xff]
    %v837 = vld [vmem:[%s829 + $0x38] sm:$0x7f]
    %v839 = vsel %vm59, %v731, 0
    %v842 = vsel %vm63, %v837, 0
    %844 = vmatprep.subr.mxu0 0.0
    %845 = vmatpush1.msra.mxu0 %v830
    %846 = vmatprep.subr.mxu0 0.0
    %847 = vmatpush1.msra.mxu0 %v831
    %848 = vmatprep.subr.mxu0 0.0
    %849 = vmatpush1.msra.mxu0 %v832
    %850 = vmatprep.subr.mxu0 0.0
    %851 = vmatpush1.msra.mxu0 %v833
    %852 = vmatprep.subr.mxu0 0.0
    %853 = vmatpush1.msra.mxu0 %v834
    %854 = vmatprep.subr.mxu0 0.0
    %855 = vmatpush1.msra.mxu0 %v835
    %856 = vmatprep.subr.mxu0 0.0
    %857 = vmatpush1.msra.mxu0 %v836
    %858 = vmatprep.subr.mxu0 0.0
    %859 = vmatpush1.msra.mxu0 %v842
    %860 = vmatprep.subr.mxu0 0.0
    %861 = vmatpush1.msra.mxu0 0.0
    %862 = vmatprep.subr.mxu0 0.0
    %863 = vmatpush1.msra.mxu0 0.0
    %864 = vmatprep.subr.mxu0 0.0
    %865 = vmatpush1.msra.mxu0 0.0
    %866 = vmatprep.subr.mxu0 0.0
    %867 = vmatpush1.msra.mxu0 0.0
    %868 = vmatprep.subr.mxu0 0.0
    %869 = vmatpush1.msra.mxu0 0.0
    %870 = vmatprep.subr.mxu0 0.0
    %871 = vmatpush1.msra.mxu0 0.0
    %872 = vmatprep.subr.mxu0 0.0
    %873 = vmatpush1.msra.mxu0 0.0
    %874 = vmatprep.subr.mxu0 0.0
    %875 = vmatpush1.msra.mxu0 0.0
    %876 = vmatprep.subr.mxu0 0.0
    %877 = vmatpush1.msra.mxu0 0.0
    %878 = vmatprep.subr.mxu0 0.0
    %879 = vmatpush1.msra.mxu0 0.0
    %880 = vmatprep.subr.mxu0 0.0
    %881 = vmatpush1.msra.mxu0 0.0
    %882 = vmatprep.subr.mxu0 0.0
    %883 = vmatpush1.msra.mxu0 0.0
    %884 = vmatprep.subr.mxu0 0.0
    %885 = vmatpush1.msra.mxu0 0.0
    %886 = vmatprep.subr.mxu0 0.0
    %887 = vmatpush1.msra.mxu0 0.0
    %888 = vmatprep.subr.mxu0 0.0
    %889 = vmatpush1.msra.mxu0 0.0
    %890 = vmatprep.subr.mxu0 0.0
    %891 = vmatpush1.msra.mxu0 0.0
    %892 = vmatprep.subr.mxu0 0.0
    %893 = vmatpush1.msra.mxu0 0.0
    %894 = vmatprep.subr.mxu0 0.0
    %895 = vmatpush1.msra.mxu0 0.0
    %896 = vmatprep.subr.mxu0 0.0
    %897 = vmatpush1.msra.mxu0 0.0
    %898 = vmatprep.subr.mxu0 0.0
    %899 = vmatpush1.msra.mxu0 0.0
    %900 = vmatprep.subr.mxu0 0.0
    %901 = vmatpush1.msra.mxu0 0.0
    %902 = vmatprep.subr.mxu0 0.0
    %903 = vmatpush1.msra.mxu0 0.0
    %904 = vmatprep.subr.mxu0 0.0
    %905 = vmatpush1.msra.mxu0 0.0
    %906 = vmatprep.subr.mxu0 0.0
    %907 = vmatpush1.msra.mxu0 0.0
    %908 = vmatprep.mubr.f32.mxu0 0.0
    %909 = vmatmul.mubr.f32.gmra.mrb[0].mxu0 %v839
    %v910 = vpop.f32.mrb[0].mxu0
    %v911 = vadd.f32 0.0, %v910
    %v912 = vpop.f32.mrb[0].mxu0
    %913 = vdwg.mxu0
    %v914 = vadd.f32 %v828, %v911
    %s915 = scalar_lea.vmem %s4, 128
    %v916 = vld [vmem:[%s915] sm:$0xff]
    %v917 = vld [vmem:[%s915 + $0x8] sm:$0xff]
    %v918 = vld [vmem:[%s915 + $0x10] sm:$0xff]
    %v919 = vld [vmem:[%s915 + $0x18] sm:$0xff]
    %v920 = vld [vmem:[%s915 + $0x20] sm:$0xff]
    %v921 = vld [vmem:[%s915 + $0x28] sm:$0xff]
    %v922 = vld [vmem:[%s915 + $0x30] sm:$0xff]
    %v923 = vld [vmem:[%s915 + $0x38] sm:$0x7f]
    %v925 = vsel %vm59, %v733, 0
    %v928 = vsel %vm63, %v923, 0
    %930 = vmatprep.subr.mxu0 0.0
    %931 = vmatpush1.msra.mxu0 %v916
    %932 = vmatprep.subr.mxu0 0.0
    %933 = vmatpush1.msra.mxu0 %v917
    %934 = vmatprep.subr.mxu0 0.0
    %935 = vmatpush1.msra.mxu0 %v918
    %936 = vmatprep.subr.mxu0 0.0
    %937 = vmatpush1.msra.mxu0 %v919
    %938 = vmatprep.subr.mxu0 0.0
    %939 = vmatpush1.msra.mxu0 %v920
    %940 = vmatprep.subr.mxu0 0.0
    %941 = vmatpush1.msra.mxu0 %v921
    %942 = vmatprep.subr.mxu0 0.0
    %943 = vmatpush1.msra.mxu0 %v922
    %944 = vmatprep.subr.mxu0 0.0
    %945 = vmatpush1.msra.mxu0 %v928
    %946 = vmatprep.subr.mxu0 0.0
    %947 = vmatpush1.msra.mxu0 0.0
    %948 = vmatprep.subr.mxu0 0.0
    %949 = vmatpush1.msra.mxu0 0.0
    %950 = vmatprep.subr.mxu0 0.0
    %951 = vmatpush1.msra.mxu0 0.0
    %952 = vmatprep.subr.mxu0 0.0
    %953 = vmatpush1.msra.mxu0 0.0
    %954 = vmatprep.subr.mxu0 0.0
    %955 = vmatpush1.msra.mxu0 0.0
    %956 = vmatprep.subr.mxu0 0.0
    %957 = vmatpush1.msra.mxu0 0.0
    %958 = vmatprep.subr.mxu0 0.0
    %959 = vmatpush1.msra.mxu0 0.0
    %960 = vmatprep.subr.mxu0 0.0
    %961 = vmatpush1.msra.mxu0 0.0
    %962 = vmatprep.subr.mxu0 0.0
    %963 = vmatpush1.msra.mxu0 0.0
    %964 = vmatprep.subr.mxu0 0.0
    %965 = vmatpush1.msra.mxu0 0.0
    %966 = vmatprep.subr.mxu0 0.0
    %967 = vmatpush1.msra.mxu0 0.0
    %968 = vmatprep.subr.mxu0 0.0
    %969 = vmatpush1.msra.mxu0 0.0
    %970 = vmatprep.subr.mxu0 0.0
    %971 = vmatpush1.msra.mxu0 0.0
    %972 = vmatprep.subr.mxu0 0.0
    %973 = vmatpush1.msra.mxu0 0.0
    %974 = vmatprep.subr.mxu0 0.0
    %975 = vmatpush1.msra.mxu0 0.0
    %976 = vmatprep.subr.mxu0 0.0
    %977 = vmatpush1.msra.mxu0 0.0
    %978 = vmatprep.subr.mxu0 0.0
    %979 = vmatpush1.msra.mxu0 0.0
    %980 = vmatprep.subr.mxu0 0.0
    %981 = vmatpush1.msra.mxu0 0.0
    %982 = vmatprep.subr.mxu0 0.0
    %983 = vmatpush1.msra.mxu0 0.0
    %984 = vmatprep.subr.mxu0 0.0
    %985 = vmatpush1.msra.mxu0 0.0
    %986 = vmatprep.subr.mxu0 0.0
    %987 = vmatpush1.msra.mxu0 0.0
    %988 = vmatprep.subr.mxu0 0.0
    %989 = vmatpush1.msra.mxu0 0.0
    %990 = vmatprep.subr.mxu0 0.0
    %991 = vmatpush1.msra.mxu0 0.0
    %992 = vmatprep.subr.mxu0 0.0
    %993 = vmatpush1.msra.mxu0 0.0
    %994 = vmatprep.mubr.f32.mxu0 0.0
    %995 = vmatmul.mubr.f32.gmra.mrb[0].mxu0 %v925
    %v996 = vpop.f32.mrb[0].mxu0
    %v997 = vadd.f32 0.0, %v996
    %v998 = vpop.f32.mrb[0].mxu0
    %999 = vdwg.mxu0
    %v1000 = vadd.f32 %v914, %v997
    %s1001 = scalar_lea.vmem %s4, 192
    %v1002 = vld [vmem:[%s1001] sm:$0xff]
    %v1003 = vld [vmem:[%s1001 + $0x8] sm:$0xff]
    %v1004 = vld [vmem:[%s1001 + $0x10] sm:$0xff]
    %v1005 = vld [vmem:[%s1001 + $0x18] sm:$0xff]
    %v1006 = vld [vmem:[%s1001 + $0x20] sm:$0xff]
    %v1007 = vld [vmem:[%s1001 + $0x28] sm:$0xff]
    %v1008 = vld [vmem:[%s1001 + $0x30] sm:$0xff]
    %v1009 = vld [vmem:[%s1001 + $0x38] sm:$0x7f]
    %v1011 = vsel %vm59, %v735, 0
    %v1014 = vsel %vm63, %v1009, 0
    %1016 = vmatprep.subr.mxu0 0.0
    %1017 = vmatpush1.msra.mxu0 %v1002
    %1018 = vmatprep.subr.mxu0 0.0
    %1019 = vmatpush1.msra.mxu0 %v1003
    %1020 = vmatprep.subr.mxu0 0.0
    %1021 = vmatpush1.msra.mxu0 %v1004
    %1022 = vmatprep.subr.mxu0 0.0
    %1023 = vmatpush1.msra.mxu0 %v1005
    %1024 = vmatprep.subr.mxu0 0.0
    %1025 = vmatpush1.msra.mxu0 %v1006
    %1026 = vmatprep.subr.mxu0 0.0
    %1027 = vmatpush1.msra.mxu0 %v1007
    %1028 = vmatprep.subr.mxu0 0.0
    %1029 = vmatpush1.msra.mxu0 %v1008
    %1030 = vmatprep.subr.mxu0 0.0
    %1031 = vmatpush1.msra.mxu0 %v1014
    %1032 = vmatprep.subr.mxu0 0.0
    %1033 = vmatpush1.msra.mxu0 0.0
    %1034 = vmatprep.subr.mxu0 0.0
    %1035 = vmatpush1.msra.mxu0 0.0
    %1036 = vmatprep.subr.mxu0 0.0
    %1037 = vmatpush1.msra.mxu0 0.0
    %1038 = vmatprep.subr.mxu0 0.0
    %1039 = vmatpush1.msra.mxu0 0.0
    %1040 = vmatprep.subr.mxu0 0.0
    %1041 = vmatpush1.msra.mxu0 0.0
    %1042 = vmatprep.subr.mxu0 0.0
    %1043 = vmatpush1.msra.mxu0 0.0
    %1044 = vmatprep.subr.mxu0 0.0
    %1045 = vmatpush1.msra.mxu0 0.0
    %1046 = vmatprep.subr.mxu0 0.0
    %1047 = vmatpush1.msra.mxu0 0.0
    %1048 = vmatprep.subr.mxu0 0.0
    %1049 = vmatpush1.msra.mxu0 0.0
    %1050 = vmatprep.subr.mxu0 0.0
    %1051 = vmatpush1.msra.mxu0 0.0
    %1052 = vmatprep.subr.mxu0 0.0
    %1053 = vmatpush1.msra.mxu0 0.0
    %1054 = vmatprep.subr.mxu0 0.0
    %1055 = vmatpush1.msra.mxu0 0.0
    %1056 = vmatprep.subr.mxu0 0.0
    %1057 = vmatpush1.msra.mxu0 0.0
    %1058 = vmatprep.subr.mxu0 0.0
    %1059 = vmatpush1.msra.mxu0 0.0
    %1060 = vmatprep.subr.mxu0 0.0
    %1061 = vmatpush1.msra.mxu0 0.0
    %1062 = vmatprep.subr.mxu0 0.0
    %1063 = vmatpush1.msra.mxu0 0.0
    %1064 = vmatprep.subr.mxu0 0.0
    %1065 = vmatpush1.msra.mxu0 0.0
    %1066 = vmatprep.subr.mxu0 0.0
    %1067 = vmatpush1.msra.mxu0 0.0
    %1068 = vmatprep.subr.mxu0 0.0
    %1069 = vmatpush1.msra.mxu0 0.0
    %1070 = vmatprep.subr.mxu0 0.0
    %1071 = vmatpush1.msra.mxu0 0.0
    %1072 = vmatprep.subr.mxu0 0.0
    %1073 = vmatpush1.msra.mxu0 0.0
    %1074 = vmatprep.subr.mxu0 0.0
    %1075 = vmatpush1.msra.mxu0 0.0
    %1076 = vmatprep.subr.mxu0 0.0
    %1077 = vmatpush1.msra.mxu0 0.0
    %1078 = vmatprep.subr.mxu0 0.0
    %1079 = vmatpush1.msra.mxu0 0.0
    %1080 = vmatprep.mubr.f32.mxu0 0.0
    %1081 = vmatmul.mubr.f32.gmra.mrb[0].mxu0 %v1011
    %v1082 = vpop.f32.mrb[0].mxu0
    %v1083 = vadd.f32 0.0, %v1082
    %v1084 = vpop.f32.mrb[0].mxu0
    %1085 = vdwg.mxu0
    %v1086 = vadd.f32 %v1000, %v1083
    %s1087 = scalar_lea.vmem %s4, 256
    %v1088 = vld [vmem:[%s1087] sm:$0xff]
    %v1089 = vld [vmem:[%s1087 + $0x8] sm:$0xff]
    %v1090 = vld [vmem:[%s1087 + $0x10] sm:$0xff]
    %v1091 = vld [vmem:[%s1087 + $0x18] sm:$0xff]
    %v1092 = vld [vmem:[%s1087 + $0x20] sm:$0xff]
    %v1093 = vld [vmem:[%s1087 + $0x28] sm:$0xff]
    %v1094 = vld [vmem:[%s1087 + $0x30] sm:$0xff]
    %v1095 = vld [vmem:[%s1087 + $0x38] sm:$0x7f]
    %v1097 = vsel %vm59, %v737, 0
    %v1100 = vsel %vm63, %v1095, 0
    %1102 = vmatprep.subr.mxu0 0.0
    %1103 = vmatpush1.msra.mxu0 %v1088
    %1104 = vmatprep.subr.mxu0 0.0
    %1105 = vmatpush1.msra.mxu0 %v1089
    %1106 = vmatprep.subr.mxu0 0.0
    %1107 = vmatpush1.msra.mxu0 %v1090
    %1108 = vmatprep.subr.mxu0 0.0
    %1109 = vmatpush1.msra.mxu0 %v1091
    %1110 = vmatprep.subr.mxu0 0.0
    %1111 = vmatpush1.msra.mxu0 %v1092
    %1112 = vmatprep.subr.mxu0 0.0
    %1113 = vmatpush1.msra.mxu0 %v1093
    %1114 = vmatprep.subr.mxu0 0.0
    %1115 = vmatpush1.msra.mxu0 %v1094
    %1116 = vmatprep.subr.mxu0 0.0
    %1117 = vmatpush1.msra.mxu0 %v1100
    %1118 = vmatprep.subr.mxu0 0.0
    %1119 = vmatpush1.msra.mxu0 0.0
    %1120 = vmatprep.subr.mxu0 0.0
    %1121 = vmatpush1.msra.mxu0 0.0
    %1122 = vmatprep.subr.mxu0 0.0
    %1123 = vmatpush1.msra.mxu0 0.0
    %1124 = vmatprep.subr.mxu0 0.0
    %1125 = vmatpush1.msra.mxu0 0.0
    %1126 = vmatprep.subr.mxu0 0.0
    %1127 = vmatpush1.msra.mxu0 0.0
    %1128 = vmatprep.subr.mxu0 0.0
    %1129 = vmatpush1.msra.mxu0 0.0
    %1130 = vmatprep.subr.mxu0 0.0
    %1131 = vmatpush1.msra.mxu0 0.0
    %1132 = vmatprep.subr.mxu0 0.0
    %1133 = vmatpush1.msra.mxu0 0.0
    %1134 = vmatprep.subr.mxu0 0.0
    %1135 = vmatpush1.msra.mxu0 0.0
    %1136 = vmatprep.subr.mxu0 0.0
    %1137 = vmatpush1.msra.mxu0 0.0
    %1138 = vmatprep.subr.mxu0 0.0
    %1139 = vmatpush1.msra.mxu0 0.0
    %1140 = vmatprep.subr.mxu0 0.0
    %1141 = vmatpush1.msra.mxu0 0.0
    %1142 = vmatprep.subr.mxu0 0.0
    %1143 = vmatpush1.msra.mxu0 0.0
    %1144 = vmatprep.subr.mxu0 0.0
    %1145 = vmatpush1.msra.mxu0 0.0
    %1146 = vmatprep.subr.mxu0 0.0
    %1147 = vmatpush1.msra.mxu0 0.0
    %1148 = vmatprep.subr.mxu0 0.0
    %1149 = vmatpush1.msra.mxu0 0.0
    %1150 = vmatprep.subr.mxu0 0.0
    %1151 = vmatpush1.msra.mxu0 0.0
    %1152 = vmatprep.subr.mxu0 0.0
    %1153 = vmatpush1.msra.mxu0 0.0
    %1154 = vmatprep.subr.mxu0 0.0
    %1155 = vmatpush1.msra.mxu0 0.0
    %1156 = vmatprep.subr.mxu0 0.0
    %1157 = vmatpush1.msra.mxu0 0.0
    %1158 = vmatprep.subr.mxu0 0.0
    %1159 = vmatpush1.msra.mxu0 0.0
    %1160 = vmatprep.subr.mxu0 0.0
    %1161 = vmatpush1.msra.mxu0 0.0
    %1162 = vmatprep.subr.mxu0 0.0
    %1163 = vmatpush1.msra.mxu0 0.0
    %1164 = vmatprep.subr.mxu0 0.0
    %1165 = vmatpush1.msra.mxu0 0.0
    %1166 = vmatprep.mubr.f32.mxu0 0.0
    %1167 = vmatmul.mubr.f32.gmra.mrb[0].mxu0 %v1097
    %v1168 = vpop.f32.mrb[0].mxu0
    %v1169 = vadd.f32 0.0, %v1168
    %v1170 = vpop.f32.mrb[0].mxu0
    %1171 = vdwg.mxu0
    %v1172 = vadd.f32 %v1086, %v1169
    %s1173 = scalar_lea.vmem %s4, 320
    %v1174 = vld [vmem:[%s1173] sm:$0xff]
    %v1175 = vld [vmem:[%s1173 + $0x8] sm:$0xff]
    %v1176 = vld [vmem:[%s1173 + $0x10] sm:$0xff]
    %v1177 = vld [vmem:[%s1173 + $0x18] sm:$0xff]
    %v1178 = vld [vmem:[%s1173 + $0x20] sm:$0xff]
    %v1179 = vld [vmem:[%s1173 + $0x28] sm:$0xff]
    %v1180 = vld [vmem:[%s1173 + $0x30] sm:$0xff]
    %v1181 = vld [vmem:[%s1173 + $0x38] sm:$0x7f]
    %v1183 = vsel %vm59, %v739, 0
    %v1186 = vsel %vm63, %v1181, 0
    %1188 = vmatprep.subr.mxu0 0.0
    %1189 = vmatpush1.msra.mxu0 %v1174
    %1190 = vmatprep.subr.mxu0 0.0
    %1191 = vmatpush1.msra.mxu0 %v1175
    %1192 = vmatprep.subr.mxu0 0.0
    %1193 = vmatpush1.msra.mxu0 %v1176
    %1194 = vmatprep.subr.mxu0 0.0
    %1195 = vmatpush1.msra.mxu0 %v1177
    %1196 = vmatprep.subr.mxu0 0.0
    %1197 = vmatpush1.msra.mxu0 %v1178
    %1198 = vmatprep.subr.mxu0 0.0
    %1199 = vmatpush1.msra.mxu0 %v1179
    %1200 = vmatprep.subr.mxu0 0.0
    %1201 = vmatpush1.msra.mxu0 %v1180
    %1202 = vmatprep.subr.mxu0 0.0
    %1203 = vmatpush1.msra.mxu0 %v1186
    %1204 = vmatprep.subr.mxu0 0.0
    %1205 = vmatpush1.msra.mxu0 0.0
    %1206 = vmatprep.subr.mxu0 0.0
    %1207 = vmatpush1.msra.mxu0 0.0
    %1208 = vmatprep.subr.mxu0 0.0
    %1209 = vmatpush1.msra.mxu0 0.0
    %1210 = vmatprep.subr.mxu0 0.0
    %1211 = vmatpush1.msra.mxu0 0.0
    %1212 = vmatprep.subr.mxu0 0.0
    %1213 = vmatpush1.msra.mxu0 0.0
    %1214 = vmatprep.subr.mxu0 0.0
    %1215 = vmatpush1.msra.mxu0 0.0
    %1216 = vmatprep.subr.mxu0 0.0
    %1217 = vmatpush1.msra.mxu0 0.0
    %1218 = vmatprep.subr.mxu0 0.0
    %1219 = vmatpush1.msra.mxu0 0.0
    %1220 = vmatprep.subr.mxu0 0.0
    %1221 = vmatpush1.msra.mxu0 0.0
    %1222 = vmatprep.subr.mxu0 0.0
    %1223 = vmatpush1.msra.mxu0 0.0
    %1224 = vmatprep.subr.mxu0 0.0
    %1225 = vmatpush1.msra.mxu0 0.0
    %1226 = vmatprep.subr.mxu0 0.0
    %1227 = vmatpush1.msra.mxu0 0.0
    %1228 = vmatprep.subr.mxu0 0.0
    %1229 = vmatpush1.msra.mxu0 0.0
    %1230 = vmatprep.subr.mxu0 0.0
    %1231 = vmatpush1.msra.mxu0 0.0
    %1232 = vmatprep.subr.mxu0 0.0
    %1233 = vmatpush1.msra.mxu0 0.0
    %1234 = vmatprep.subr.mxu0 0.0
    %1235 = vmatpush1.msra.mxu0 0.0
    %1236 = vmatprep.subr.mxu0 0.0
    %1237 = vmatpush1.msra.mxu0 0.0
    %1238 = vmatprep.subr.mxu0 0.0
    %1239 = vmatpush1.msra.mxu0 0.0
    %1240 = vmatprep.subr.mxu0 0.0
    %1241 = vmatpush1.msra.mxu0 0.0
    %1242 = vmatprep.subr.mxu0 0.0
    %1243 = vmatpush1.msra.mxu0 0.0
    %1244 = vmatprep.subr.mxu0 0.0
    %1245 = vmatpush1.msra.mxu0 0.0
    %1246 = vmatprep.subr.mxu0 0.0
    %1247 = vmatpush1.msra.mxu0 0.0
    %1248 = vmatprep.subr.mxu0 0.0
    %1249 = vmatpush1.msra.mxu0 0.0
    %1250 = vmatprep.subr.mxu0 0.0
    %1251 = vmatpush1.msra.mxu0 0.0
    %1252 = vmatprep.mubr.f32.mxu0 0.0
    %1253 = vmatmul.mubr.f32.gmra.mrb[0].mxu0 %v1183
    %v1254 = vpop.f32.mrb[0].mxu0
    %v1255 = vadd.f32 0.0, %v1254
    %v1256 = vpop.f32.mrb[0].mxu0
    %1257 = vdwg.mxu0
    %v1258 = vadd.f32 %v1172, %v1255
    %s1259 = scalar_lea.vmem %s4, 384
    %v1260 = vld [vmem:[%s1259] sm:$0xff]
    %v1261 = vld [vmem:[%s1259 + $0x8] sm:$0xff]
    %v1262 = vld [vmem:[%s1259 + $0x10] sm:$0xff]
    %v1263 = vld [vmem:[%s1259 + $0x18] sm:$0xff]
    %v1264 = vld [vmem:[%s1259 + $0x20] sm:$0xff]
    %v1265 = vld [vmem:[%s1259 + $0x28] sm:$0xff]
    %v1266 = vld [vmem:[%s1259 + $0x30] sm:$0xff]
    %v1267 = vld [vmem:[%s1259 + $0x38] sm:$0x7f]
    %v1269 = vsel %vm59, %v741, 0
    %v1272 = vsel %vm63, %v1267, 0
    %1274 = vmatprep.subr.mxu0 0.0
    %1275 = vmatpush1.msra.mxu0 %v1260
    %1276 = vmatprep.subr.mxu0 0.0
    %1277 = vmatpush1.msra.mxu0 %v1261
    %1278 = vmatprep.subr.mxu0 0.0
    %1279 = vmatpush1.msra.mxu0 %v1262
    %1280 = vmatprep.subr.mxu0 0.0
    %1281 = vmatpush1.msra.mxu0 %v1263
    %1282 = vmatprep.subr.mxu0 0.0
    %1283 = vmatpush1.msra.mxu0 %v1264
    %1284 = vmatprep.subr.mxu0 0.0
    %1285 = vmatpush1.msra.mxu0 %v1265
    %1286 = vmatprep.subr.mxu0 0.0
    %1287 = vmatpush1.msra.mxu0 %v1266
    %1288 = vmatprep.subr.mxu0 0.0
    %1289 = vmatpush1.msra.mxu0 %v1272
    %1290 = vmatprep.subr.mxu0 0.0
    %1291 = vmatpush1.msra.mxu0 0.0
    %1292 = vmatprep.subr.mxu0 0.0
    %1293 = vmatpush1.msra.mxu0 0.0
    %1294 = vmatprep.subr.mxu0 0.0
    %1295 = vmatpush1.msra.mxu0 0.0
    %1296 = vmatprep.subr.mxu0 0.0
    %1297 = vmatpush1.msra.mxu0 0.0
    %1298 = vmatprep.subr.mxu0 0.0
    %1299 = vmatpush1.msra.mxu0 0.0
    %1300 = vmatprep.subr.mxu0 0.0
    %1301 = vmatpush1.msra.mxu0 0.0
    %1302 = vmatprep.subr.mxu0 0.0
    %1303 = vmatpush1.msra.mxu0 0.0
    %1304 = vmatprep.subr.mxu0 0.0
    %1305 = vmatpush1.msra.mxu0 0.0
    %1306 = vmatprep.subr.mxu0 0.0
    %1307 = vmatpush1.msra.mxu0 0.0
    %1308 = vmatprep.subr.mxu0 0.0
    %1309 = vmatpush1.msra.mxu0 0.0
    %1310 = vmatprep.subr.mxu0 0.0
    %1311 = vmatpush1.msra.mxu0 0.0
    %1312 = vmatprep.subr.mxu0 0.0
    %1313 = vmatpush1.msra.mxu0 0.0
    %1314 = vmatprep.subr.mxu0 0.0
    %1315 = vmatpush1.msra.mxu0 0.0
    %1316 = vmatprep.subr.mxu0 0.0
    %1317 = vmatpush1.msra.mxu0 0.0
    %1318 = vmatprep.subr.mxu0 0.0
    %1319 = vmatpush1.msra.mxu0 0.0
    %1320 = vmatprep.subr.mxu0 0.0
    %1321 = vmatpush1.msra.mxu0 0.0
    %1322 = vmatprep.subr.mxu0 0.0
    %1323 = vmatpush1.msra.mxu0 0.0
    %1324 = vmatprep.subr.mxu0 0.0
    %1325 = vmatpush1.msra.mxu0 0.0
    %1326 = vmatprep.subr.mxu0 0.0
    %1327 = vmatpush1.msra.mxu0 0.0
    %1328 = vmatprep.subr.mxu0 0.0
    %1329 = vmatpush1.msra.mxu0 0.0
    %1330 = vmatprep.subr.mxu0 0.0
    %1331 = vmatpush1.msra.mxu0 0.0
    %1332 = vmatprep.subr.mxu0 0.0
    %1333 = vmatpush1.msra.mxu0 0.0
    %1334 = vmatprep.subr.mxu0 0.0
    %1335 = vmatpush1.msra.mxu0 0.0
    %1336 = vmatprep.subr.mxu0 0.0
    %1337 = vmatpush1.msra.mxu0 0.0
    %1338 = vmatprep.mubr.f32.mxu0 0.0
    %1339 = vmatmul.mubr.f32.gmra.mrb[0].mxu0 %v1269
    %v1340 = vpop.f32.mrb[0].mxu0
    %v1341 = vadd.f32 0.0, %v1340
    %v1342 = vpop.f32.mrb[0].mxu0
    %1343 = vdwg.mxu0
    %v1344 = vadd.f32 %v1258, %v1341
    %s1345 = scalar_lea.vmem %s4, 448
    %v1346 = vld [vmem:[%s1345] sm:$0xff]
    %v1347 = vld [vmem:[%s1345 + $0x8] sm:$0xff]
    %v1348 = vld [vmem:[%s1345 + $0x10] sm:$0xff]
    %v1349 = vld [vmem:[%s1345 + $0x18] sm:$0xff]
    %v1350 = vld [vmem:[%s1345 + $0x20] sm:$0xff]
    %v1351 = vld [vmem:[%s1345 + $0x28] sm:$0xff]
    %v1352 = vld [vmem:[%s1345 + $0x30] sm:$0xff]
    %v1353 = vld [vmem:[%s1345 + $0x38] sm:$0x7f]
    %v1355 = vsel %vm59, %v743, 0
    %v1358 = vsel %vm63, %v1353, 0
    %1360 = vmatprep.subr.mxu0 0.0
    %1361 = vmatpush1.msra.mxu0 %v1346
    %1362 = vmatprep.subr.mxu0 0.0
    %1363 = vmatpush1.msra.mxu0 %v1347
    %1364 = vmatprep.subr.mxu0 0.0
    %1365 = vmatpush1.msra.mxu0 %v1348
    %1366 = vmatprep.subr.mxu0 0.0
    %1367 = vmatpush1.msra.mxu0 %v1349
    %1368 = vmatprep.subr.mxu0 0.0
    %1369 = vmatpush1.msra.mxu0 %v1350
    %1370 = vmatprep.subr.mxu0 0.0
    %1371 = vmatpush1.msra.mxu0 %v1351
    %1372 = vmatprep.subr.mxu0 0.0
    %1373 = vmatpush1.msra.mxu0 %v1352
    %1374 = vmatprep.subr.mxu0 0.0
    %1375 = vmatpush1.msra.mxu0 %v1358
    %1376 = vmatprep.subr.mxu0 0.0
    %1377 = vmatpush1.msra.mxu0 0.0
    %1378 = vmatprep.subr.mxu0 0.0
    %1379 = vmatpush1.msra.mxu0 0.0
    %1380 = vmatprep.subr.mxu0 0.0
    %1381 = vmatpush1.msra.mxu0 0.0
    %1382 = vmatprep.subr.mxu0 0.0
    %1383 = vmatpush1.msra.mxu0 0.0
    %1384 = vmatprep.subr.mxu0 0.0
    %1385 = vmatpush1.msra.mxu0 0.0
    %1386 = vmatprep.subr.mxu0 0.0
    %1387 = vmatpush1.msra.mxu0 0.0
    %1388 = vmatprep.subr.mxu0 0.0
    %1389 = vmatpush1.msra.mxu0 0.0
    %1390 = vmatprep.subr.mxu0 0.0
    %1391 = vmatpush1.msra.mxu0 0.0
    %1392 = vmatprep.subr.mxu0 0.0
    %1393 = vmatpush1.msra.mxu0 0.0
    %1394 = vmatprep.subr.mxu0 0.0
    %1395 = vmatpush1.msra.mxu0 0.0
    %1396 = vmatprep.subr.mxu0 0.0
    %1397 = vmatpush1.msra.mxu0 0.0
    %1398 = vmatprep.subr.mxu0 0.0
    %1399 = vmatpush1.msra.mxu0 0.0
    %1400 = vmatprep.subr.mxu0 0.0
    %1401 = vmatpush1.msra.mxu0 0.0
    %1402 = vmatprep.subr.mxu0 0.0
    %1403 = vmatpush1.msra.mxu0 0.0
    %1404 = vmatprep.subr.mxu0 0.0
    %1405 = vmatpush1.msra.mxu0 0.0
    %1406 = vmatprep.subr.mxu0 0.0
    %1407 = vmatpush1.msra.mxu0 0.0
    %1408 = vmatprep.subr.mxu0 0.0
    %1409 = vmatpush1.msra.mxu0 0.0
    %1410 = vmatprep.subr.mxu0 0.0
    %1411 = vmatpush1.msra.mxu0 0.0
    %1412 = vmatprep.subr.mxu0 0.0
    %1413 = vmatpush1.msra.mxu0 0.0
    %1414 = vmatprep.subr.mxu0 0.0
    %1415 = vmatpush1.msra.mxu0 0.0
    %1416 = vmatprep.subr.mxu0 0.0
    %1417 = vmatpush1.msra.mxu0 0.0
    %1418 = vmatprep.subr.mxu0 0.0
    %1419 = vmatpush1.msra.mxu0 0.0
    %1420 = vmatprep.subr.mxu0 0.0
    %1421 = vmatpush1.msra.mxu0 0.0
    %1422 = vmatprep.subr.mxu0 0.0
    %1423 = vmatpush1.msra.mxu0 0.0
    %1424 = vmatprep.mubr.f32.mxu0 0.0
    %1425 = vmatmul.mubr.f32.gmra.mrb[0].mxu0 %v1355
    %v1426 = vpop.f32.mrb[0].mxu0
    %v1427 = vadd.f32 0.0, %v1426
    %v1428 = vpop.f32.mrb[0].mxu0
    %1429 = vdwg.mxu0
    %v1430 = vadd.f32 %v1344, %v1427
    %v1431 = vld [vmem:[%s2] sm:$0x3]
    %s1432 = scalar_lea.vmem %s2, 2
    %v1433 = vld [vmem:[%s1432] sm:$0x3]
    %s1434 = scalar_lea.vmem %s2, 4
    %v1435 = vld [vmem:[%s1434] sm:$0x3]
    %s1436 = scalar_lea.vmem %s2, 6
    %v1437 = vld [vmem:[%s1436] sm:$0x3]
    %s1438 = scalar_lea.vmem %s2, 8
    %v1439 = vld [vmem:[%s1438] sm:$0x3]
    %s1440 = scalar_lea.vmem %s2, 10
    %v1441 = vld [vmem:[%s1440] sm:$0x3]
    %s1442 = scalar_lea.vmem %s2, 12
    %v1443 = vld [vmem:[%s1442] sm:$0x3]
    %s1444 = scalar_lea.vmem %s2, 14
    %v1445 = vld [vmem:[%s1444] sm:$0x3]
    %v1446 = vld [vmem:[%s5] sm:$0xff]
    %v1447 = vld [vmem:[%s5 + $0x8] sm:$0xff]
    %v1448 = vld [vmem:[%s5 + $0x10] sm:$0x1f]
    %vm1449 = vcmask 171008
    %v1451 = vsel %vm1449, %v1431, 0
    %vm1453 = vcmask 1044480
    %v1455 = vsel %vm1453, %v1448, 0
    %1457 = vmatprep.subr.mxu0 0.0
    %1458 = vmatpush1.msra.mxu0 %v1446
    %1459 = vmatprep.subr.mxu0 0.0
    %1460 = vmatpush1.msra.mxu0 %v1447
    %1461 = vmatprep.subr.mxu0 0.0
    %1462 = vmatpush1.msra.mxu0 %v1455
    %1463 = vmatprep.subr.mxu0 0.0
    %1464 = vmatpush1.msra.mxu0 0.0
    %1465 = vmatprep.subr.mxu0 0.0
    %1466 = vmatpush1.msra.mxu0 0.0
    %1467 = vmatprep.subr.mxu0 0.0
    %1468 = vmatpush1.msra.mxu0 0.0
    %1469 = vmatprep.subr.mxu0 0.0
    %1470 = vmatpush1.msra.mxu0 0.0
    %1471 = vmatprep.subr.mxu0 0.0
    %1472 = vmatpush1.msra.mxu0 0.0
    %1473 = vmatprep.subr.mxu0 0.0
    %1474 = vmatpush1.msra.mxu0 0.0
    %1475 = vmatprep.subr.mxu0 0.0
    %1476 = vmatpush1.msra.mxu0 0.0
    %1477 = vmatprep.subr.mxu0 0.0
    %1478 = vmatpush1.msra.mxu0 0.0
    %1479 = vmatprep.subr.mxu0 0.0
    %1480 = vmatpush1.msra.mxu0 0.0
    %1481 = vmatprep.subr.mxu0 0.0
    %1482 = vmatpush1.msra.mxu0 0.0
    %1483 = vmatprep.subr.mxu0 0.0
    %1484 = vmatpush1.msra.mxu0 0.0
    %1485 = vmatprep.subr.mxu0 0.0
    %1486 = vmatpush1.msra.mxu0 0.0
    %1487 = vmatprep.subr.mxu0 0.0
    %1488 = vmatpush1.msra.mxu0 0.0
    %1489 = vmatprep.subr.mxu0 0.0
    %1490 = vmatpush1.msra.mxu0 0.0
    %1491 = vmatprep.subr.mxu0 0.0
    %1492 = vmatpush1.msra.mxu0 0.0
    %1493 = vmatprep.subr.mxu0 0.0
    %1494 = vmatpush1.msra.mxu0 0.0
    %1495 = vmatprep.subr.mxu0 0.0
    %1496 = vmatpush1.msra.mxu0 0.0
    %1497 = vmatprep.subr.mxu0 0.0
    %1498 = vmatpush1.msra.mxu0 0.0
    %1499 = vmatprep.subr.mxu0 0.0
    %1500 = vmatpush1.msra.mxu0 0.0
    %1501 = vmatprep.subr.mxu0 0.0
    %1502 = vmatpush1.msra.mxu0 0.0
    %1503 = vmatprep.subr.mxu0 0.0
    %1504 = vmatpush1.msra.mxu0 0.0
    %1505 = vmatprep.subr.mxu0 0.0
    %1506 = vmatpush1.msra.mxu0 0.0
    %1507 = vmatprep.subr.mxu0 0.0
    %1508 = vmatpush1.msra.mxu0 0.0
    %1509 = vmatprep.subr.mxu0 0.0
    %1510 = vmatpush1.msra.mxu0 0.0
    %1511 = vmatprep.subr.mxu0 0.0
    %1512 = vmatpush1.msra.mxu0 0.0
    %1513 = vmatprep.subr.mxu0 0.0
    %1514 = vmatpush1.msra.mxu0 0.0
    %1515 = vmatprep.subr.mxu0 0.0
    %1516 = vmatpush1.msra.mxu0 0.0
    %1517 = vmatprep.subr.mxu0 0.0
    %1518 = vmatpush1.msra.mxu0 0.0
    %1519 = vmatprep.subr.mxu0 0.0
    %1520 = vmatpush1.msra.mxu0 0.0
    %1521 = vmatprep.mubr.f32.mxu0 0.0
    %1522 = vmatmul.mubr.f32.gmra.mrb[0].mxu0 %v1451
    %v1523 = vpop.f32.mrb[0].mxu0
    %v1524 = vadd.f32 0.0, %v1523
    %v1525 = vpop.f32.mrb[0].mxu0
    %1526 = vdwg.mxu0
    %v1527 = vadd.f32 %v1430, %v1524
    %s1528 = scalar_lea.vmem %s5, 24
    %v1529 = vld [vmem:[%s1528] sm:$0xff]
    %v1530 = vld [vmem:[%s1528 + $0x8] sm:$0xff]
    %v1531 = vld [vmem:[%s1528 + $0x10] sm:$0x1f]
    %v1533 = vsel %vm1449, %v1433, 0
    %v1536 = vsel %vm1453, %v1531, 0
    %1538 = vmatprep.subr.mxu0 0.0
    %1539 = vmatpush1.msra.mxu0 %v1529
    %1540 = vmatprep.subr.mxu0 0.0
    %1541 = vmatpush1.msra.mxu0 %v1530
    %1542 = vmatprep.subr.mxu0 0.0
    %1543 = vmatpush1.msra.mxu0 %v1536
    %1544 = vmatprep.subr.mxu0 0.0
    %1545 = vmatpush1.msra.mxu0 0.0
    %1546 = vmatprep.subr.mxu0 0.0
    %1547 = vmatpush1.msra.mxu0 0.0
    %1548 = vmatprep.subr.mxu0 0.0
    %1549 = vmatpush1.msra.mxu0 0.0
    %1550 = vmatprep.subr.mxu0 0.0
    %1551 = vmatpush1.msra.mxu0 0.0
    %1552 = vmatprep.subr.mxu0 0.0
    %1553 = vmatpush1.msra.mxu0 0.0
    %1554 = vmatprep.subr.mxu0 0.0
    %1555 = vmatpush1.msra.mxu0 0.0
    %1556 = vmatprep.subr.mxu0 0.0
    %1557 = vmatpush1.msra.mxu0 0.0
    %1558 = vmatprep.subr.mxu0 0.0
    %1559 = vmatpush1.msra.mxu0 0.0
    %1560 = vmatprep.subr.mxu0 0.0
    %1561 = vmatpush1.msra.mxu0 0.0
    %1562 = vmatprep.subr.mxu0 0.0
    %1563 = vmatpush1.msra.mxu0 0.0
    %1564 = vmatprep.subr.mxu0 0.0
    %1565 = vmatpush1.msra.mxu0 0.0
    %1566 = vmatprep.subr.mxu0 0.0
    %1567 = vmatpush1.msra.mxu0 0.0
    %1568 = vmatprep.subr.mxu0 0.0
    %1569 = vmatpush1.msra.mxu0 0.0
    %1570 = vmatprep.subr.mxu0 0.0
    %1571 = vmatpush1.msra.mxu0 0.0
    %1572 = vmatprep.subr.mxu0 0.0
    %1573 = vmatpush1.msra.mxu0 0.0
    %1574 = vmatprep.subr.mxu0 0.0
    %1575 = vmatpush1.msra.mxu0 0.0
    %1576 = vmatprep.subr.mxu0 0.0
    %1577 = vmatpush1.msra.mxu0 0.0
    %1578 = vmatprep.subr.mxu0 0.0
    %1579 = vmatpush1.msra.mxu0 0.0
    %1580 = vmatprep.subr.mxu0 0.0
    %1581 = vmatpush1.msra.mxu0 0.0
    %1582 = vmatprep.subr.mxu0 0.0
    %1583 = vmatpush1.msra.mxu0 0.0
    %1584 = vmatprep.subr.mxu0 0.0
    %1585 = vmatpush1.msra.mxu0 0.0
    %1586 = vmatprep.subr.mxu0 0.0
    %1587 = vmatpush1.msra.mxu0 0.0
    %1588 = vmatprep.subr.mxu0 0.0
    %1589 = vmatpush1.msra.mxu0 0.0
    %1590 = vmatprep.subr.mxu0 0.0
    %1591 = vmatpush1.msra.mxu0 0.0
    %1592 = vmatprep.subr.mxu0 0.0
    %1593 = vmatpush1.msra.mxu0 0.0
    %1594 = vmatprep.subr.mxu0 0.0
    %1595 = vmatpush1.msra.mxu0 0.0
    %1596 = vmatprep.subr.mxu0 0.0
    %1597 = vmatpush1.msra.mxu0 0.0
    %1598 = vmatprep.subr.mxu0 0.0
    %1599 = vmatpush1.msra.mxu0 0.0
    %1600 = vmatprep.subr.mxu0 0.0
    %1601 = vmatpush1.msra.mxu0 0.0
    %1602 = vmatprep.mubr.f32.mxu0 0.0
    %1603 = vmatmul.mubr.f32.gmra.mrb[0].mxu0 %v1533
    %v1604 = vpop.f32.mrb[0].mxu0
    %v1605 = vadd.f32 0.0, %v1604
    %v1606 = vpop.f32.mrb[0].mxu0
    %1607 = vdwg.mxu0
    %v1608 = vadd.f32 %v1527, %v1605
    %s1609 = scalar_lea.vmem %s5, 48
    %v1610 = vld [vmem:[%s1609] sm:$0xff]
    %v1611 = vld [vmem:[%s1609 + $0x8] sm:$0xff]
    %v1612 = vld [vmem:[%s1609 + $0x10] sm:$0x1f]
    %v1614 = vsel %vm1449, %v1435, 0
    %v1617 = vsel %vm1453, %v1612, 0
    %1619 = vmatprep.subr.mxu0 0.0
    %1620 = vmatpush1.msra.mxu0 %v1610
    %1621 = vmatprep.subr.mxu0 0.0
    %1622 = vmatpush1.msra.mxu0 %v1611
    %1623 = vmatprep.subr.mxu0 0.0
    %1624 = vmatpush1.msra.mxu0 %v1617
    %1625 = vmatprep.subr.mxu0 0.0
    %1626 = vmatpush1.msra.mxu0 0.0
    %1627 = vmatprep.subr.mxu0 0.0
    %1628 = vmatpush1.msra.mxu0 0.0
    %1629 = vmatprep.subr.mxu0 0.0
    %1630 = vmatpush1.msra.mxu0 0.0
    %1631 = vmatprep.subr.mxu0 0.0
    %1632 = vmatpush1.msra.mxu0 0.0
    %1633 = vmatprep.subr.mxu0 0.0
    %1634 = vmatpush1.msra.mxu0 0.0
    %1635 = vmatprep.subr.mxu0 0.0
    %1636 = vmatpush1.msra.mxu0 0.0
    %1637 = vmatprep.subr.mxu0 0.0
    %1638 = vmatpush1.msra.mxu0 0.0
    %1639 = vmatprep.subr.mxu0 0.0
    %1640 = vmatpush1.msra.mxu0 0.0
    %1641 = vmatprep.subr.mxu0 0.0
    %1642 = vmatpush1.msra.mxu0 0.0
    %1643 = vmatprep.subr.mxu0 0.0
    %1644 = vmatpush1.msra.mxu0 0.0
    %1645 = vmatprep.subr.mxu0 0.0
    %1646 = vmatpush1.msra.mxu0 0.0
    %1647 = vmatprep.subr.mxu0 0.0
    %1648 = vmatpush1.msra.mxu0 0.0
    %1649 = vmatprep.subr.mxu0 0.0
    %1650 = vmatpush1.msra.mxu0 0.0
    %1651 = vmatprep.subr.mxu0 0.0
    %1652 = vmatpush1.msra.mxu0 0.0
    %1653 = vmatprep.subr.mxu0 0.0
    %1654 = vmatpush1.msra.mxu0 0.0
    %1655 = vmatprep.subr.mxu0 0.0
    %1656 = vmatpush1.msra.mxu0 0.0
    %1657 = vmatprep.subr.mxu0 0.0
    %1658 = vmatpush1.msra.mxu0 0.0
    %1659 = vmatprep.subr.mxu0 0.0
    %1660 = vmatpush1.msra.mxu0 0.0
    %1661 = vmatprep.subr.mxu0 0.0
    %1662 = vmatpush1.msra.mxu0 0.0
    %1663 = vmatprep.subr.mxu0 0.0
    %1664 = vmatpush1.msra.mxu0 0.0
    %1665 = vmatprep.subr.mxu0 0.0
    %1666 = vmatpush1.msra.mxu0 0.0
    %1667 = vmatprep.subr.mxu0 0.0
    %1668 = vmatpush1.msra.mxu0 0.0
    %1669 = vmatprep.subr.mxu0 0.0
    %1670 = vmatpush1.msra.mxu0 0.0
    %1671 = vmatprep.subr.mxu0 0.0
    %1672 = vmatpush1.msra.mxu0 0.0
    %1673 = vmatprep.subr.mxu0 0.0
    %1674 = vmatpush1.msra.mxu0 0.0
    %1675 = vmatprep.subr.mxu0 0.0
    %1676 = vmatpush1.msra.mxu0 0.0
    %1677 = vmatprep.subr.mxu0 0.0
    %1678 = vmatpush1.msra.mxu0 0.0
    %1679 = vmatprep.subr.mxu0 0.0
    %1680 = vmatpush1.msra.mxu0 0.0
    %1681 = vmatprep.subr.mxu0 0.0
    %1682 = vmatpush1.msra.mxu0 0.0
    %1683 = vmatprep.mubr.f32.mxu0 0.0
    %1684 = vmatmul.mubr.f32.gmra.mrb[0].mxu0 %v1614
    %v1685 = vpop.f32.mrb[0].mxu0
    %v1686 = vadd.f32 0.0, %v1685
    %v1687 = vpop.f32.mrb[0].mxu0
    %1688 = vdwg.mxu0
    %v1689 = vadd.f32 %v1608, %v1686
    %s1690 = scalar_lea.vmem %s5, 72
    %v1691 = vld [vmem:[%s1690] sm:$0xff]
    %v1692 = vld [vmem:[%s1690 + $0x8] sm:$0xff]
    %v1693 = vld [vmem:[%s1690 + $0x10] sm:$0x1f]
    %v1695 = vsel %vm1449, %v1437, 0
    %v1698 = vsel %vm1453, %v1693, 0
    %1700 = vmatprep.subr.mxu0 0.0
    %1701 = vmatpush1.msra.mxu0 %v1691
    %1702 = vmatprep.subr.mxu0 0.0
    %1703 = vmatpush1.msra.mxu0 %v1692
    %1704 = vmatprep.subr.mxu0 0.0
    %1705 = vmatpush1.msra.mxu0 %v1698
    %1706 = vmatprep.subr.mxu0 0.0
    %1707 = vmatpush1.msra.mxu0 0.0
    %1708 = vmatprep.subr.mxu0 0.0
    %1709 = vmatpush1.msra.mxu0 0.0
    %1710 = vmatprep.subr.mxu0 0.0
    %1711 = vmatpush1.msra.mxu0 0.0
    %1712 = vmatprep.subr.mxu0 0.0
    %1713 = vmatpush1.msra.mxu0 0.0
    %1714 = vmatprep.subr.mxu0 0.0
    %1715 = vmatpush1.msra.mxu0 0.0
    %1716 = vmatprep.subr.mxu0 0.0
    %1717 = vmatpush1.msra.mxu0 0.0
    %1718 = vmatprep.subr.mxu0 0.0
    %1719 = vmatpush1.msra.mxu0 0.0
    %1720 = vmatprep.subr.mxu0 0.0
    %1721 = vmatpush1.msra.mxu0 0.0
    %1722 = vmatprep.subr.mxu0 0.0
    %1723 = vmatpush1.msra.mxu0 0.0
    %1724 = vmatprep.subr.mxu0 0.0
    %1725 = vmatpush1.msra.mxu0 0.0
    %1726 = vmatprep.subr.mxu0 0.0
    %1727 = vmatpush1.msra.mxu0 0.0
    %1728 = vmatprep.subr.mxu0 0.0
    %1729 = vmatpush1.msra.mxu0 0.0
    %1730 = vmatprep.subr.mxu0 0.0
    %1731 = vmatpush1.msra.mxu0 0.0
    %1732 = vmatprep.subr.mxu0 0.0
    %1733 = vmatpush1.msra.mxu0 0.0
    %1734 = vmatprep.subr.mxu0 0.0
    %1735 = vmatpush1.msra.mxu0 0.0
    %1736 = vmatprep.subr.mxu0 0.0
    %1737 = vmatpush1.msra.mxu0 0.0
    %1738 = vmatprep.subr.mxu0 0.0
    %1739 = vmatpush1.msra.mxu0 0.0
    %1740 = vmatprep.subr.mxu0 0.0
    %1741 = vmatpush1.msra.mxu0 0.0
    %1742 = vmatprep.subr.mxu0 0.0
    %1743 = vmatpush1.msra.mxu0 0.0
    %1744 = vmatprep.subr.mxu0 0.0
    %1745 = vmatpush1.msra.mxu0 0.0
    %1746 = vmatprep.subr.mxu0 0.0
    %1747 = vmatpush1.msra.mxu0 0.0
    %1748 = vmatprep.subr.mxu0 0.0
    %1749 = vmatpush1.msra.mxu0 0.0
    %1750 = vmatprep.subr.mxu0 0.0
    %1751 = vmatpush1.msra.mxu0 0.0
    %1752 = vmatprep.subr.mxu0 0.0
    %1753 = vmatpush1.msra.mxu0 0.0
    %1754 = vmatprep.subr.mxu0 0.0
    %1755 = vmatpush1.msra.mxu0 0.0
    %1756 = vmatprep.subr.mxu0 0.0
    %1757 = vmatpush1.msra.mxu0 0.0
    %1758 = vmatprep.subr.mxu0 0.0
    %1759 = vmatpush1.msra.mxu0 0.0
    %1760 = vmatprep.subr.mxu0 0.0
    %1761 = vmatpush1.msra.mxu0 0.0
    %1762 = vmatprep.subr.mxu0 0.0
    %1763 = vmatpush1.msra.mxu0 0.0
    %1764 = vmatprep.mubr.f32.mxu0 0.0
    %1765 = vmatmul.mubr.f32.gmra.mrb[0].mxu0 %v1695
    %v1766 = vpop.f32.mrb[0].mxu0
    %v1767 = vadd.f32 0.0, %v1766
    %v1768 = vpop.f32.mrb[0].mxu0
    %1769 = vdwg.mxu0
    %v1770 = vadd.f32 %v1689, %v1767
    %s1771 = scalar_lea.vmem %s5, 96
    %v1772 = vld [vmem:[%s1771] sm:$0xff]
    %v1773 = vld [vmem:[%s1771 + $0x8] sm:$0xff]
    %v1774 = vld [vmem:[%s1771 + $0x10] sm:$0x1f]
    %v1776 = vsel %vm1449, %v1439, 0
    %v1779 = vsel %vm1453, %v1774, 0
    %1781 = vmatprep.subr.mxu0 0.0
    %1782 = vmatpush1.msra.mxu0 %v1772
    %1783 = vmatprep.subr.mxu0 0.0
    %1784 = vmatpush1.msra.mxu0 %v1773
    %1785 = vmatprep.subr.mxu0 0.0
    %1786 = vmatpush1.msra.mxu0 %v1779
    %1787 = vmatprep.subr.mxu0 0.0
    %1788 = vmatpush1.msra.mxu0 0.0
    %1789 = vmatprep.subr.mxu0 0.0
    %1790 = vmatpush1.msra.mxu0 0.0
    %1791 = vmatprep.subr.mxu0 0.0
    %1792 = vmatpush1.msra.mxu0 0.0
    %1793 = vmatprep.subr.mxu0 0.0
    %1794 = vmatpush1.msra.mxu0 0.0
    %1795 = vmatprep.subr.mxu0 0.0
    %1796 = vmatpush1.msra.mxu0 0.0
    %1797 = vmatprep.subr.mxu0 0.0
    %1798 = vmatpush1.msra.mxu0 0.0
    %1799 = vmatprep.subr.mxu0 0.0
    %1800 = vmatpush1.msra.mxu0 0.0
    %1801 = vmatprep.subr.mxu0 0.0
    %1802 = vmatpush1.msra.mxu0 0.0
    %1803 = vmatprep.subr.mxu0 0.0
    %1804 = vmatpush1.msra.mxu0 0.0
    %1805 = vmatprep.subr.mxu0 0.0
    %1806 = vmatpush1.msra.mxu0 0.0
    %1807 = vmatprep.subr.mxu0 0.0
    %1808 = vmatpush1.msra.mxu0 0.0
    %1809 = vmatprep.subr.mxu0 0.0
    %1810 = vmatpush1.msra.mxu0 0.0
    %1811 = vmatprep.subr.mxu0 0.0
    %1812 = vmatpush1.msra.mxu0 0.0
    %1813 = vmatprep.subr.mxu0 0.0
    %1814 = vmatpush1.msra.mxu0 0.0
    %1815 = vmatprep.subr.mxu0 0.0
    %1816 = vmatpush1.msra.mxu0 0.0
    %1817 = vmatprep.subr.mxu0 0.0
    %1818 = vmatpush1.msra.mxu0 0.0
    %1819 = vmatprep.subr.mxu0 0.0
    %1820 = vmatpush1.msra.mxu0 0.0
    %1821 = vmatprep.subr.mxu0 0.0
    %1822 = vmatpush1.msra.mxu0 0.0
    %1823 = vmatprep.subr.mxu0 0.0
    %1824 = vmatpush1.msra.mxu0 0.0
    %1825 = vmatprep.subr.mxu0 0.0
    %1826 = vmatpush1.msra.mxu0 0.0
    %1827 = vmatprep.subr.mxu0 0.0
    %1828 = vmatpush1.msra.mxu0 0.0
    %1829 = vmatprep.subr.mxu0 0.0
    %1830 = vmatpush1.msra.mxu0 0.0
    %1831 = vmatprep.subr.mxu0 0.0
    %1832 = vmatpush1.msra.mxu0 0.0
    %1833 = vmatprep.subr.mxu0 0.0
    %1834 = vmatpush1.msra.mxu0 0.0
    %1835 = vmatprep.subr.mxu0 0.0
    %1836 = vmatpush1.msra.mxu0 0.0
    %1837 = vmatprep.subr.mxu0 0.0
    %1838 = vmatpush1.msra.mxu0 0.0
    %1839 = vmatprep.subr.mxu0 0.0
    %1840 = vmatpush1.msra.mxu0 0.0
    %1841 = vmatprep.subr.mxu0 0.0
    %1842 = vmatpush1.msra.mxu0 0.0
    %1843 = vmatprep.subr.mxu0 0.0
    %1844 = vmatpush1.msra.mxu0 0.0
    %1845 = vmatprep.mubr.f32.mxu0 0.0
    %1846 = vmatmul.mubr.f32.gmra.mrb[0].mxu0 %v1776
    %v1847 = vpop.f32.mrb[0].mxu0
    %v1848 = vadd.f32 0.0, %v1847
    %v1849 = vpop.f32.mrb[0].mxu0
    %1850 = vdwg.mxu0
    %v1851 = vadd.f32 %v1770, %v1848
    %s1852 = scalar_lea.vmem %s5, 120
    %v1853 = vld [vmem:[%s1852] sm:$0xff]
    %v1854 = vld [vmem:[%s1852 + $0x8] sm:$0xff]
    %v1855 = vld [vmem:[%s1852 + $0x10] sm:$0x1f]
    %v1857 = vsel %vm1449, %v1441, 0
    %v1860 = vsel %vm1453, %v1855, 0
    %1862 = vmatprep.subr.mxu0 0.0
    %1863 = vmatpush1.msra.mxu0 %v1853
    %1864 = vmatprep.subr.mxu0 0.0
    %1865 = vmatpush1.msra.mxu0 %v1854
    %1866 = vmatprep.subr.mxu0 0.0
    %1867 = vmatpush1.msra.mxu0 %v1860
    %1868 = vmatprep.subr.mxu0 0.0
    %1869 = vmatpush1.msra.mxu0 0.0
    %1870 = vmatprep.subr.mxu0 0.0
    %1871 = vmatpush1.msra.mxu0 0.0
    %1872 = vmatprep.subr.mxu0 0.0
    %1873 = vmatpush1.msra.mxu0 0.0
    %1874 = vmatprep.subr.mxu0 0.0
    %1875 = vmatpush1.msra.mxu0 0.0
    %1876 = vmatprep.subr.mxu0 0.0
    %1877 = vmatpush1.msra.mxu0 0.0
    %1878 = vmatprep.subr.mxu0 0.0
    %1879 = vmatpush1.msra.mxu0 0.0
    %1880 = vmatprep.subr.mxu0 0.0
    %1881 = vmatpush1.msra.mxu0 0.0
    %1882 = vmatprep.subr.mxu0 0.0
    %1883 = vmatpush1.msra.mxu0 0.0
    %1884 = vmatprep.subr.mxu0 0.0
    %1885 = vmatpush1.msra.mxu0 0.0
    %1886 = vmatprep.subr.mxu0 0.0
    %1887 = vmatpush1.msra.mxu0 0.0
    %1888 = vmatprep.subr.mxu0 0.0
    %1889 = vmatpush1.msra.mxu0 0.0
    %1890 = vmatprep.subr.mxu0 0.0
    %1891 = vmatpush1.msra.mxu0 0.0
    %1892 = vmatprep.subr.mxu0 0.0
    %1893 = vmatpush1.msra.mxu0 0.0
    %1894 = vmatprep.subr.mxu0 0.0
    %1895 = vmatpush1.msra.mxu0 0.0
    %1896 = vmatprep.subr.mxu0 0.0
    %1897 = vmatpush1.msra.mxu0 0.0
    %1898 = vmatprep.subr.mxu0 0.0
    %1899 = vmatpush1.msra.mxu0 0.0
    %1900 = vmatprep.subr.mxu0 0.0
    %1901 = vmatpush1.msra.mxu0 0.0
    %1902 = vmatprep.subr.mxu0 0.0
    %1903 = vmatpush1.msra.mxu0 0.0
    %1904 = vmatprep.subr.mxu0 0.0
    %1905 = vmatpush1.msra.mxu0 0.0
    %1906 = vmatprep.subr.mxu0 0.0
    %1907 = vmatpush1.msra.mxu0 0.0
    %1908 = vmatprep.subr.mxu0 0.0
    %1909 = vmatpush1.msra.mxu0 0.0
    %1910 = vmatprep.subr.mxu0 0.0
    %1911 = vmatpush1.msra.mxu0 0.0
    %1912 = vmatprep.subr.mxu0 0.0
    %1913 = vmatpush1.msra.mxu0 0.0
    %1914 = vmatprep.subr.mxu0 0.0
    %1915 = vmatpush1.msra.mxu0 0.0
    %1916 = vmatprep.subr.mxu0 0.0
    %1917 = vmatpush1.msra.mxu0 0.0
    %1918 = vmatprep.subr.mxu0 0.0
    %1919 = vmatpush1.msra.mxu0 0.0
    %1920 = vmatprep.subr.mxu0 0.0
    %1921 = vmatpush1.msra.mxu0 0.0
    %1922 = vmatprep.subr.mxu0 0.0
    %1923 = vmatpush1.msra.mxu0 0.0
    %1924 = vmatprep.subr.mxu0 0.0
    %1925 = vmatpush1.msra.mxu0 0.0
    %1926 = vmatprep.mubr.f32.mxu0 0.0
    %1927 = vmatmul.mubr.f32.gmra.mrb[0].mxu0 %v1857
    %v1928 = vpop.f32.mrb[0].mxu0
    %v1929 = vadd.f32 0.0, %v1928
    %v1930 = vpop.f32.mrb[0].mxu0
    %1931 = vdwg.mxu0
    %v1932 = vadd.f32 %v1851, %v1929
    %s1933 = scalar_lea.vmem %s5, 144
    %v1934 = vld [vmem:[%s1933] sm:$0xff]
    %v1935 = vld [vmem:[%s1933 + $0x8] sm:$0xff]
    %v1936 = vld [vmem:[%s1933 + $0x10] sm:$0x1f]
    %v1938 = vsel %vm1449, %v1443, 0
    %v1941 = vsel %vm1453, %v1936, 0
    %1943 = vmatprep.subr.mxu0 0.0
    %1944 = vmatpush1.msra.mxu0 %v1934
    %1945 = vmatprep.subr.mxu0 0.0
    %1946 = vmatpush1.msra.mxu0 %v1935
    %1947 = vmatprep.subr.mxu0 0.0
    %1948 = vmatpush1.msra.mxu0 %v1941
    %1949 = vmatprep.subr.mxu0 0.0
    %1950 = vmatpush1.msra.mxu0 0.0
    %1951 = vmatprep.subr.mxu0 0.0
    %1952 = vmatpush1.msra.mxu0 0.0
    %1953 = vmatprep.subr.mxu0 0.0
    %1954 = vmatpush1.msra.mxu0 0.0
    %1955 = vmatprep.subr.mxu0 0.0
    %1956 = vmatpush1.msra.mxu0 0.0
    %1957 = vmatprep.subr.mxu0 0.0
    %1958 = vmatpush1.msra.mxu0 0.0
    %1959 = vmatprep.subr.mxu0 0.0
    %1960 = vmatpush1.msra.mxu0 0.0
    %1961 = vmatprep.subr.mxu0 0.0
    %1962 = vmatpush1.msra.mxu0 0.0
    %1963 = vmatprep.subr.mxu0 0.0
    %1964 = vmatpush1.msra.mxu0 0.0
    %1965 = vmatprep.subr.mxu0 0.0
    %1966 = vmatpush1.msra.mxu0 0.0
    %1967 = vmatprep.subr.mxu0 0.0
    %1968 = vmatpush1.msra.mxu0 0.0
    %1969 = vmatprep.subr.mxu0 0.0
    %1970 = vmatpush1.msra.mxu0 0.0
    %1971 = vmatprep.subr.mxu0 0.0
    %1972 = vmatpush1.msra.mxu0 0.0
    %1973 = vmatprep.subr.mxu0 0.0
    %1974 = vmatpush1.msra.mxu0 0.0
    %1975 = vmatprep.subr.mxu0 0.0
    %1976 = vmatpush1.msra.mxu0 0.0
    %1977 = vmatprep.subr.mxu0 0.0
    %1978 = vmatpush1.msra.mxu0 0.0
    %1979 = vmatprep.subr.mxu0 0.0
    %1980 = vmatpush1.msra.mxu0 0.0
    %1981 = vmatprep.subr.mxu0 0.0
    %1982 = vmatpush1.msra.mxu0 0.0
    %1983 = vmatprep.subr.mxu0 0.0
    %1984 = vmatpush1.msra.mxu0 0.0
    %1985 = vmatprep.subr.mxu0 0.0
    %1986 = vmatpush1.msra.mxu0 0.0
    %1987 = vmatprep.subr.mxu0 0.0
    %1988 = vmatpush1.msra.mxu0 0.0
    %1989 = vmatprep.subr.mxu0 0.0
    %1990 = vmatpush1.msra.mxu0 0.0
    %1991 = vmatprep.subr.mxu0 0.0
    %1992 = vmatpush1.msra.mxu0 0.0
    %1993 = vmatprep.subr.mxu0 0.0
    %1994 = vmatpush1.msra.mxu0 0.0
    %1995 = vmatprep.subr.mxu0 0.0
    %1996 = vmatpush1.msra.mxu0 0.0
    %1997 = vmatprep.subr.mxu0 0.0
    %1998 = vmatpush1.msra.mxu0 0.0
    %1999 = vmatprep.subr.mxu0 0.0
    %2000 = vmatpush1.msra.mxu0 0.0
    %2001 = vmatprep.subr.mxu0 0.0
    %2002 = vmatpush1.msra.mxu0 0.0
    %2003 = vmatprep.subr.mxu0 0.0
    %2004 = vmatpush1.msra.mxu0 0.0
    %2005 = vmatprep.subr.mxu0 0.0
    %2006 = vmatpush1.msra.mxu0 0.0
    %2007 = vmatprep.mubr.f32.mxu0 0.0
    %2008 = vmatmul.mubr.f32.gmra.mrb[0].mxu0 %v1938
    %v2009 = vpop.f32.mrb[0].mxu0
    %v2010 = vadd.f32 0.0, %v2009
    %v2011 = vpop.f32.mrb[0].mxu0
    %2012 = vdwg.mxu0
    %v2013 = vadd.f32 %v1932, %v2010
    %s2014 = scalar_lea.vmem %s5, 168
    %v2015 = vld [vmem:[%s2014] sm:$0xff]
    %v2016 = vld [vmem:[%s2014 + $0x8] sm:$0xff]
    %v2017 = vld [vmem:[%s2014 + $0x10] sm:$0x1f]
    %v2019 = vsel %vm1449, %v1445, 0
    %v2022 = vsel %vm1453, %v2017, 0
    %2024 = vmatprep.subr.mxu0 0.0
    %2025 = vmatpush1.msra.mxu0 %v2015
    %2026 = vmatprep.subr.mxu0 0.0
    %2027 = vmatpush1.msra.mxu0 %v2016
    %2028 = vmatprep.subr.mxu0 0.0
    %2029 = vmatpush1.msra.mxu0 %v2022
    %2030 = vmatprep.subr.mxu0 0.0
    %2031 = vmatpush1.msra.mxu0 0.0
    %2032 = vmatprep.subr.mxu0 0.0
    %2033 = vmatpush1.msra.mxu0 0.0
    %2034 = vmatprep.subr.mxu0 0.0
    %2035 = vmatpush1.msra.mxu0 0.0
    %2036 = vmatprep.subr.mxu0 0.0
    %2037 = vmatpush1.msra.mxu0 0.0
    %2038 = vmatprep.subr.mxu0 0.0
    %2039 = vmatpush1.msra.mxu0 0.0
    %2040 = vmatprep.subr.mxu0 0.0
    %2041 = vmatpush1.msra.mxu0 0.0
    %2042 = vmatprep.subr.mxu0 0.0
    %2043 = vmatpush1.msra.mxu0 0.0
    %2044 = vmatprep.subr.mxu0 0.0
    %2045 = vmatpush1.msra.mxu0 0.0
    %2046 = vmatprep.subr.mxu0 0.0
    %2047 = vmatpush1.msra.mxu0 0.0
    %2048 = vmatprep.subr.mxu0 0.0
    %2049 = vmatpush1.msra.mxu0 0.0
    %2050 = vmatprep.subr.mxu0 0.0
    %2051 = vmatpush1.msra.mxu0 0.0
    %2052 = vmatprep.subr.mxu0 0.0
    %2053 = vmatpush1.msra.mxu0 0.0
    %2054 = vmatprep.subr.mxu0 0.0
    %2055 = vmatpush1.msra.mxu0 0.0
    %2056 = vmatprep.subr.mxu0 0.0
    %2057 = vmatpush1.msra.mxu0 0.0
    %2058 = vmatprep.subr.mxu0 0.0
    %2059 = vmatpush1.msra.mxu0 0.0
    %2060 = vmatprep.subr.mxu0 0.0
    %2061 = vmatpush1.msra.mxu0 0.0
    %2062 = vmatprep.subr.mxu0 0.0
    %2063 = vmatpush1.msra.mxu0 0.0
    %2064 = vmatprep.subr.mxu0 0.0
    %2065 = vmatpush1.msra.mxu0 0.0
    %2066 = vmatprep.subr.mxu0 0.0
    %2067 = vmatpush1.msra.mxu0 0.0
    %2068 = vmatprep.subr.mxu0 0.0
    %2069 = vmatpush1.msra.mxu0 0.0
    %2070 = vmatprep.subr.mxu0 0.0
    %2071 = vmatpush1.msra.mxu0 0.0
    %2072 = vmatprep.subr.mxu0 0.0
    %2073 = vmatpush1.msra.mxu0 0.0
    %2074 = vmatprep.subr.mxu0 0.0
    %2075 = vmatpush1.msra.mxu0 0.0
    %2076 = vmatprep.subr.mxu0 0.0
    %2077 = vmatpush1.msra.mxu0 0.0
    %2078 = vmatprep.subr.mxu0 0.0
    %2079 = vmatpush1.msra.mxu0 0.0
    %2080 = vmatprep.subr.mxu0 0.0
    %2081 = vmatpush1.msra.mxu0 0.0
    %2082 = vmatprep.subr.mxu0 0.0
    %2083 = vmatpush1.msra.mxu0 0.0
    %2084 = vmatprep.subr.mxu0 0.0
    %2085 = vmatpush1.msra.mxu0 0.0
    %2086 = vmatprep.subr.mxu0 0.0
    %2087 = vmatpush1.msra.mxu0 0.0
    %2088 = vmatprep.mubr.f32.mxu0 0.0
    %2089 = vmatmul.mubr.f32.gmra.mrb[0].mxu0 %v2019
    %v2090 = vpop.f32.mrb[0].mxu0
    %v2091 = vadd.f32 0.0, %v2090
    %v2092 = vpop.f32.mrb[0].mxu0
    %2093 = vdwg.mxu0
    %v2094 = vadd.f32 %v2013, %v2091
    %v2095 = vld [vmem:[%s6] sm:$0x1]
    %v2097 = vlaneseq
    %v2098 = vshrl.u32 %v2097, 7
    %v2099 = vsub.s32 0, %v2098
    %v2100 = vrot.slane %v2095, %v2099
    %v2102 = vadd.f32 %v2094, %v2100
    %2103 = vst [vmem:[#allocation2] sm:$0x3] %v2102
    // Predicated region
    $region30: #{tpu_custom_call.1} parent=1 // pred_check
      _
    $region31: #{tpu_custom_call.1} parent=1 // pred_check_branch
      %2105 = sbr.rel (0) target = $region33
    $region32: #{tpu_custom_call.1} parent=1 // pred_region
      %s2107 = ssub.s32 32, 32
      %2108 = vsyncadd [#allocation3], %s2107
      %s2110 = sshll.u32 [#allocation2], 4
      %s2111 = int_to_ptr.vmem [resolvable:$true] %s2110
      %2113 = dma.vmem_to_hbm [thread:$0]  %s2111, 32, %s7, [#allocation3]
    $region33: #{tpu_custom_call.1} parent=1 // pred_fallthru
      _
    // Predicated region
    $region34: #{tpu_custom_call.1} parent=1 // pred_check
      _
    $region35: #{tpu_custom_call.1} parent=1 // pred_check_branch
      %2115 = sbr.rel (0) target = $region37
    $region36: #{tpu_custom_call.1} parent=1 // pred_region
      %2116 = dma.done [#allocation3], 32
    $region37: #{tpu_custom_call.1} parent=1 // pred_fallthru
      _
    %2117 = vsyncpa [#allocation3], 1

</llo_original>
